<compile_context>
chip_gen: v7x
topology: tpu7x:2x2x1
jax: 0.10.0
libtpu: 0.0.40
codegen_flags: <defaults>
</compile_context>

<pallas_src>
import functools

import numpy as np
import jax
import jax.numpy as jnp
from jax import lax
from jax.experimental import pallas as pl
from jax.experimental.pallas import tpu as pltpu


# ----------------------------------------------------------------------------
# Fused Pallas kernel: whole LeNet forward for one batch tile of TB samples.
#
# Layouts (TB = batch-tile size, all column packings padded to 128 lanes):
#   xim_ref  : (4, 6*TB, 140)  xim[c, r*TB+b, kh*28+col] = x[b, 4r+c+kh, col]
#                               (c = 2*rp + di : pool-row parity x pool offset)
#   w1f_ref  : (140, 256)      conv1 Toeplitz, kh folded into K;
#                               cols = dj*128 + jp*10 + cout (120..127 zero)
#   w2t_ref  : (5, 128, 256)   conv2 Toeplitz: rows = jp1*10 + cin (pad 128),
#                               cols = dj2*128 + jp2*20 + co2 (80..127 zero)
#   wfc1_ref : (4, 128, 128)   fc1, torch flatten permutation folded in
#   wfc2_ref : (128, 128)      fc2 (classes in first 10 lanes)
#   act1a/b  : (6*TB, 128)     rows = r*TB + b  (pooled conv1 row = 2*r + rp),
#                               cols = jp1*10 + cin
#   act2     : (4*TB, 128)     rows = ip2*TB + b, cols = jp2*20 + co2
# ----------------------------------------------------------------------------
def _lenet_kernel(xim_ref, w1f_ref, b1_ref, w2t_ref, b2_ref,
                  wfc1_ref, bfc1_ref, wfc2_ref, bfc2_ref, out_ref,
                  act1a_ref, act1b_ref, act2_ref, *, compute_dtype):
    TB = out_ref.shape[0]
    act1_refs = (act1a_ref, act1b_ref)

    # ------- conv1 (5x5, 1->10), kh folded into K -> pool -> bias -> relu ----
    w1f = w1f_ref[...]                 # hoisted: one weight load for 4 matmuls
    b1 = b1_ref[...]
    for rp in range(2):                # parity of the pooled conv1 row
        a0 = jnp.dot(xim_ref[2 * rp + 0], w1f,
                     preferred_element_type=jnp.float32)          # (6TB, 256)
        a1 = jnp.dot(xim_ref[2 * rp + 1], w1f,
                     preferred_element_type=jnp.float32)
        p = jnp.maximum(a0, a1)                    # pool over row offset di
        q = jnp.maximum(p[:, :128], p[:, 128:])    # pool over col offset dj
        act1_refs[rp][...] = jnp.maximum(q + b1, 0.0).astype(compute_dtype)

    # ------- conv2 (5x5, 10->20): kh2 outer, 2 accumulators, K=128 -----------
    acc2 = [None, None]
    for kh2 in range(5):
        w2 = w2t_ref[kh2]                                         # (128, 256)
        for di2 in range(2):
            m2 = di2 + kh2             # needed pooled conv1 row = 2*ip2 + m2
            src = act1_refs[m2 % 2][(m2 // 2) * TB:(m2 // 2 + 4) * TB, :]
            part = jnp.dot(src, w2, preferred_element_type=jnp.float32)
            acc2[di2] = part if acc2[di2] is None else acc2[di2] + part
    p2 = jnp.maximum(acc2[0], acc2[1])             # pool over row offset di2
    s2 = jnp.maximum(p2[:, :128], p2[:, 128:])     # pool over col offset dj2
    act2_ref[...] = jnp.maximum(s2 + b2_ref[...], 0.0).astype(compute_dtype)

    # ------- flatten(320) -> fc1 -> relu -> fc2 -> log_softmax ---------------
    h = None
    for ip2 in range(4):
        part = jnp.dot(act2_ref[ip2 * TB:(ip2 + 1) * TB, :], wfc1_ref[ip2],
                       preferred_element_type=jnp.float32)
        h = part if h is None else h + part
    h = jnp.maximum(h + bfc1_ref[...], 0.0)                        # (TB, 128)
    logits = jnp.dot(h.astype(compute_dtype), wfc2_ref[...],
                     preferred_element_type=jnp.float32) + bfc2_ref[...]
    # padded class lanes carry a -1e30 bias -> exp underflows to 0 in the lse
    mx = jnp.max(logits, axis=-1, keepdims=True)
    s = logits - mx
    lse = jnp.log(jnp.sum(jnp.exp(s), axis=-1, keepdims=True))
    out_ref[...] = s - lse


# ----------------------------------------------------------------------------
# Trace-time weight re-packing (tiny tensors, plain JAX, fused by XLA)
# ----------------------------------------------------------------------------
def _conv1_toeplitz_folded(w1):
    """(10,1,5,5) -> (140,256):
    W[kh*28+col, dj*128+jp*10+co] = w1[co,0,kh, col-(2jp+dj)]; pad lanes zero."""
    w1 = w1.reshape(10, 5, 5)
    col = np.arange(28)[:, None, None]
    dj = np.arange(2)[None, :, None]
    jp = np.arange(12)[None, None, :]
    kw = col - (2 * jp + dj)                                  # (28, 2, 12)
    valid = (kw >= 0) & (kw <= 4)
    g = w1[:, :, np.clip(kw, 0, 4)]                           # (10,5,28,2,12)
    g = jnp.where(jnp.asarray(valid)[None, None], g, 0.0)
    g = jnp.transpose(g, (1, 2, 3, 4, 0))                     # [kh,col,dj,jp,co]
    g = g.reshape(5, 28, 2, 120)
    g = jnp.pad(g, ((0, 0), (0, 0), (0, 0), (0, 8)))          # (5,28,2,128)
    return g.reshape(140, 256)


def _conv2_toeplitz(w2):
    """(20,10,5,5) -> (5,128,256):
    W[kh2, jp1*10+cin, dj2*128+jp2*20+co2] = w2[co2,cin,kh2, jp1-(2jp2+dj2)]."""
    jp1 = np.arange(12)[:, None, None]
    dj2 = np.arange(2)[None, :, None]
    jp2 = np.arange(4)[None, None, :]
    kw2 = jp1 - (2 * jp2 + dj2)                               # (12, 2, 4)
    valid = (kw2 >= 0) & (kw2 <= 4)
    g = w2[:, :, :, np.clip(kw2, 0, 4)]                       # (20,10,5,12,2,4)
    g = jnp.where(jnp.asarray(valid)[None, None, None], g, 0.0)
    g = jnp.transpose(g, (2, 3, 1, 4, 5, 0))                  # [kh2,jp1,cin,dj2,jp2,co2]
    g = g.reshape(5, 120, 2, 80)
    g = jnp.pad(g, ((0, 0), (0, 8), (0, 0), (0, 48)))         # (5,128,2,128)
    return g.reshape(5, 128, 256)


def _fc1_pack(fc1_w):
    """(50,320) torch layout (flat = co2*16+ip2*4+jp2) -> (4,128,128) with
    rows (per ip2) = jp2*20 + co2, matching the kernel's act2 layout."""
    w = fc1_w.reshape(50, 20, 4, 4)            # [n, co2, ip2, jp2]
    w = jnp.transpose(w, (2, 3, 1, 0))         # [ip2, jp2, co2, n]
    w = w.reshape(4, 80, 50)
    return jnp.pad(w, ((0, 0), (0, 48), (0, 78)))


# ----------------------------------------------------------------------------
# Full LeNet forward (eval mode) — one pallas_call, grid over batch tiles
# ----------------------------------------------------------------------------
def lenet_forward(params, x, *, matmul_dtype=jnp.bfloat16, tb_cap=128):
    B = x.shape[0]
    assert x.shape[1:] == (1, 28, 28), x.shape
    cdt = matmul_dtype

    # Batch-tile selection: big tiles (amortize the ~0.35us/step overhead and
    # fill the MXU M-dim), capped at 128 so double-buffered input + live
    # activations stay far below the 16/32 MiB scoped-VMEM defaults; multiple
    # tiles shard across the two v7x TensorCores via the "parallel" grid axis.
    if B <= tb_cap:
        nt = 1
        TB = max(8, ((B + 7) // 8) * 8)
    else:
        nt = -(-B // tb_cap)
        TB = ((-(-B // nt) + 7) // 8) * 8
    B_pad = nt * TB

    xb = x.reshape(B, 28, 28)
    if B_pad != B:
        xb = jnp.pad(xb, ((0, B_pad - B), (0, 0), (0, 0)))
    # Row-only im2col with the conv1 kernel-row folded into the contraction:
    #   xim[t*4 + c, r*TB + b, kh*28 + col] = x[t*TB + b, 4r + c + kh, col]
    rows_idx = (np.arange(4)[:, None, None] + 4 * np.arange(6)[None, :, None]
                + np.arange(5)[None, None, :])                # (4,6,5), 0..27
    xg = xb.reshape(nt, TB, 28, 28)[:, :, rows_idx, :]        # (nt,TB,4,6,5,28)
    xim = (xg.transpose(0, 2, 3, 1, 4, 5)
             .reshape(nt * 4, 6 * TB, 140).astype(cdt))

    w1f = _conv1_toeplitz_folded(params["conv1_w"]).astype(cdt)
    w2t = _conv2_toeplitz(params["conv2_w"]).astype(cdt)
    wfc1 = _fc1_pack(params["fc1_w"]).astype(cdt)
    wfc2 = jnp.pad(params["fc2_w"].T, ((0, 78), (0, 118))).astype(cdt)

    b1t = jnp.pad(jnp.tile(params["conv1_b"], 12), (0, 8)).reshape(1, 128)
    b2t = jnp.pad(jnp.tile(params["conv2_b"], 4), (0, 48)).reshape(1, 128)
    bfc1 = jnp.pad(params["fc1_b"], (0, 78)).reshape(1, 128)
    bfc2 = jnp.concatenate(
        [params["fc2_b"], jnp.full((118,), -1e30, jnp.float32)]).reshape(1, 128)

    kernel = functools.partial(_lenet_kernel, compute_dtype=cdt)

    out = pl.pallas_call(
        kernel,
        out_shape=jax.ShapeDtypeStruct((B_pad, 128), jnp.float32),
        grid=(nt,),
        in_specs=[
            pl.BlockSpec((4, 6 * TB, 140), lambda i: (i, 0, 0)),  # im2col tile
            pl.BlockSpec((140, 256), lambda i: (0, 0)),           # conv1 W (folded)
            pl.BlockSpec((1, 128), lambda i: (0, 0)),             # conv1 bias
            pl.BlockSpec((5, 128, 256), lambda i: (0, 0, 0)),     # conv2 W
            pl.BlockSpec((1, 128), lambda i: (0, 0)),             # conv2 bias
            pl.BlockSpec((4, 128, 128), lambda i: (0, 0, 0)),     # fc1 W (permuted)
            pl.BlockSpec((1, 128), lambda i: (0, 0)),             # fc1 bias
            pl.BlockSpec((128, 128), lambda i: (0, 0)),           # fc2 W
            pl.BlockSpec((1, 128), lambda i: (0, 0)),             # fc2 bias (pad -1e30)
        ],
        out_specs=pl.BlockSpec((TB, 128), lambda i: (i, 0)),      # lane-dense out
        scratch_shapes=[
            pltpu.VMEM((6 * TB, 128), cdt),    # act1, even pooled rows
            pltpu.VMEM((6 * TB, 128), cdt),    # act1, odd pooled rows
            pltpu.VMEM((4 * TB, 128), cdt),    # act2
        ],
        compiler_params=pltpu.CompilerParams(
            dimension_semantics=("parallel",),
            vmem_limit_bytes=32 * 1024 * 1024),
    )(xim, w1f, b1t, w2t, b2t, wfc1, bfc1, wfc2, bfc2)

    return out[:B, :10]


# ----------------------------------------------------------------------------
# Pure-XLA reference (same eval-mode semantics) for a numerical self-check
# ----------------------------------------------------------------------------
def reference_forward(params, x):
    dn = ("NCHW", "OIHW", "NCHW")
    y = lax.conv_general_dilated(x, params["conv1_w"], (1, 1), "VALID",
                                 dimension_numbers=dn,
                                 precision=lax.Precision.HIGHEST)
    y = y + params["conv1_b"][None, :, None, None]
    y = lax.reduce_window(y, -jnp.inf, lax.max, (1, 1, 2, 2), (1, 1, 2, 2), "VALID")
    y = jnp.maximum(y, 0.0)
    z = lax.conv_general_dilated(y, params["conv2_w"], (1, 1), "VALID",
                                 dimension_numbers=dn,
                                 precision=lax.Precision.HIGHEST)
    z = z + params["conv2_b"][None, :, None, None]
    z = lax.reduce_window(z, -jnp.inf, lax.max, (1, 1, 2, 2), (1, 1, 2, 2), "VALID")
    z = jnp.maximum(z, 0.0)
    flat = z.reshape(x.shape[0], 320)
    h = jnp.maximum(jnp.dot(flat, params["fc1_w"].T,
                            precision=lax.Precision.HIGHEST) + params["fc1_b"], 0.0)
    logits = jnp.dot(h, params["fc2_w"].T,
                     precision=lax.Precision.HIGHEST) + params["fc2_b"]
    return jax.nn.log_softmax(logits, axis=-1)


# ----------------------------------------------------------------------------
if __name__ == "__main__":
    key = jax.random.PRNGKey(0)
    ks = jax.random.split(key, 9)
    params = {
        "conv1_w": 0.10 * jax.random.normal(ks[0], (10, 1, 5, 5), jnp.float32),
        "conv1_b": 0.10 * jax.random.normal(ks[1], (10,), jnp.float32),
        "conv2_w": 0.05 * jax.random.normal(ks[2], (20, 10, 5, 5), jnp.float32),
        "conv2_b": 0.05 * jax.random.normal(ks[3], (20,), jnp.float32),
        "fc1_w":   0.05 * jax.random.normal(ks[4], (50, 320), jnp.float32),
        "fc1_b":   0.05 * jax.random.normal(ks[5], (50,), jnp.float32),
        "fc2_w":   0.05 * jax.random.normal(ks[6], (10, 50), jnp.float32),
        "fc2_b":   0.05 * jax.random.normal(ks[7], (10,), jnp.float32),
    }
    # LeNet's flatten to 320 implies 28x28 single-channel inputs (MNIST-style).
    x = jax.random.normal(ks[8], (2, 1, 28, 28), jnp.float32)

    out = jax.block_until_ready(jax.jit(lenet_forward)(params, x))
    assert out.shape == (2, 10), out.shape

    ref = jax.block_until_ready(jax.jit(reference_forward)(params, x))
    err = float(jnp.max(jnp.abs(out - ref)))
    # Tolerance covers bf16 matmul operands (f32 accumulate); layout was
    # previously validated in pure f32 against the same reference.
    assert err < 3e-2, f"max abs err vs reference: {err}"
    assert bool(jnp.allclose(jnp.exp(out).sum(axis=-1), 1.0, atol=1e-3))
    print("KERNEL_OK")
</pallas_src>

<mosaic_0001>
module attributes {stable_mosaic.version = 11 : i64} {
  func.func @_lenet_kernel(%arg0: i32, %arg1: memref<4x48x140xbf16, #tpu.memory_space<vmem>>, %arg2: memref<140x256xbf16, #tpu.memory_space<vmem>>, %arg3: memref<1x128xf32, #tpu.memory_space<vmem>>, %arg4: memref<5x128x256xbf16, #tpu.memory_space<vmem>>, %arg5: memref<1x128xf32, #tpu.memory_space<vmem>>, %arg6: memref<4x128x128xbf16, #tpu.memory_space<vmem>>, %arg7: memref<1x128xf32, #tpu.memory_space<vmem>>, %arg8: memref<128x128xbf16, #tpu.memory_space<vmem>>, %arg9: memref<1x128xf32, #tpu.memory_space<vmem>>, %arg10: memref<8x128xf32, #tpu.memory_space<vmem>>, %arg11: memref<48x128xbf16, #tpu.memory_space<vmem>>, %arg12: memref<48x128xbf16, #tpu.memory_space<vmem>>, %arg13: memref<32x128xbf16, #tpu.memory_space<vmem>>) attributes {dimension_semantics = [#tpu.dimension_semantics<parallel>], iteration_bounds = array<i64: 1>, scalar_prefetch = 0 : i64, scratch_operands = 3 : i64, tpu.core_type = #tpu.core_type<tc>, window_params = [{transform_indices = @transform_0, window_bounds = array<i64: 4, 48, 140>}, {pipeline_mode = #tpu.pipeline_mode<synchronous>, transform_indices = @transform_1, window_bounds = array<i64: 140, 256>}, {pipeline_mode = #tpu.pipeline_mode<synchronous>, transform_indices = @transform_2, window_bounds = array<i64: 1, 128>}, {pipeline_mode = #tpu.pipeline_mode<synchronous>, transform_indices = @transform_3, window_bounds = array<i64: 5, 128, 256>}, {pipeline_mode = #tpu.pipeline_mode<synchronous>, transform_indices = @transform_4, window_bounds = array<i64: 1, 128>}, {pipeline_mode = #tpu.pipeline_mode<synchronous>, transform_indices = @transform_5, window_bounds = array<i64: 4, 128, 128>}, {pipeline_mode = #tpu.pipeline_mode<synchronous>, transform_indices = @transform_6, window_bounds = array<i64: 1, 128>}, {pipeline_mode = #tpu.pipeline_mode<synchronous>, transform_indices = @transform_7, window_bounds = array<i64: 128, 128>}, {pipeline_mode = #tpu.pipeline_mode<synchronous>, transform_indices = @transform_8, window_bounds = array<i64: 1, 128>}, {transform_indices = @transform_9, window_bounds = array<i64: 8, 128>}]} {
    %c0 = arith.constant 0 : index
    %c0_0 = arith.constant 0 : index
    %0 = vector.load %arg2[%c0, %c0_0] : memref<140x256xbf16, #tpu.memory_space<vmem>>, vector<140x256xbf16>
    %c0_1 = arith.constant 0 : index
    %c0_2 = arith.constant 0 : index
    %1 = vector.load %arg3[%c0_1, %c0_2] : memref<1x128xf32, #tpu.memory_space<vmem>>, vector<1x128xf32>
    %c0_3 = arith.constant 0 : index
    %c0_4 = arith.constant 0 : index
    %c0_5 = arith.constant 0 : index
    %2 = vector.load %arg1[%c0_3, %c0_4, %c0_5] : memref<4x48x140xbf16, #tpu.memory_space<vmem>>, vector<1x48x140xbf16>
    %3 = vector.shape_cast %2 : vector<1x48x140xbf16> to vector<48x140xbf16>
    %cst = arith.constant dense<0.000000e+00> : vector<48x256xf32>
    %4 = tpu.matmul %3, %0, %cst {dimension_numbers = #tpu.dot_dimension_numbers<[1], [0], [0], [1], [0, 0, 1, 1], [], []>} : vector<48x140xbf16>, vector<140x256xbf16>, vector<48x256xf32> -> vector<48x256xf32>
    %c1 = arith.constant 1 : index
    %c0_6 = arith.constant 0 : index
    %c0_7 = arith.constant 0 : index
    %5 = vector.load %arg1[%c1, %c0_6, %c0_7] : memref<4x48x140xbf16, #tpu.memory_space<vmem>>, vector<1x48x140xbf16>
    %6 = vector.shape_cast %5 : vector<1x48x140xbf16> to vector<48x140xbf16>
    %cst_8 = arith.constant dense<0.000000e+00> : vector<48x256xf32>
    %7 = tpu.matmul %6, %0, %cst_8 {dimension_numbers = #tpu.dot_dimension_numbers<[1], [0], [0], [1], [0, 0, 1, 1], [], []>} : vector<48x140xbf16>, vector<140x256xbf16>, vector<48x256xf32> -> vector<48x256xf32>
    %8 = arith.maximumf %4, %7 : vector<48x256xf32>
    %9 = vector.extract_strided_slice %8 {offsets = [0, 0], sizes = [48, 128], strides = [1, 1]} : vector<48x256xf32> to vector<48x128xf32>
    %10 = vector.extract_strided_slice %8 {offsets = [0, 128], sizes = [48, 128], strides = [1, 1]} : vector<48x256xf32> to vector<48x128xf32>
    %11 = arith.maximumf %9, %10 : vector<48x128xf32>
    %12 = vector.broadcast %1 : vector<1x128xf32> to vector<48x128xf32>
    %13 = arith.addf %11, %12 : vector<48x128xf32>
    %cst_9 = arith.constant 0.000000e+00 : f32
    %14 = vector.broadcast %cst_9 : f32 to vector<48x128xf32>
    %15 = arith.maximumf %13, %14 : vector<48x128xf32>
    %16 = arith.truncf %15 : vector<48x128xf32> to vector<48x128xbf16>
    %c0_10 = arith.constant 0 : index
    %c0_11 = arith.constant 0 : index
    %17 = vector.load %arg11[%c0_10, %c0_11] : memref<48x128xbf16, #tpu.memory_space<vmem>>, vector<48x128xbf16>
    tpu.vector_store %arg11[%c0_10, %c0_11], %16 {strides = array<i32>} : memref<48x128xbf16, #tpu.memory_space<vmem>>, vector<48x128xbf16>,
    %c2 = arith.constant 2 : index
    %c0_12 = arith.constant 0 : index
    %c0_13 = arith.constant 0 : index
    %18 = vector.load %arg1[%c2, %c0_12, %c0_13] : memref<4x48x140xbf16, #tpu.memory_space<vmem>>, vector<1x48x140xbf16>
    %19 = vector.shape_cast %18 : vector<1x48x140xbf16> to vector<48x140xbf16>
    %cst_14 = arith.constant dense<0.000000e+00> : vector<48x256xf32>
    %20 = tpu.matmul %19, %0, %cst_14 {dimension_numbers = #tpu.dot_dimension_numbers<[1], [0], [0], [1], [0, 0, 1, 1], [], []>} : vector<48x140xbf16>, vector<140x256xbf16>, vector<48x256xf32> -> vector<48x256xf32>
    %c3 = arith.constant 3 : index
    %c0_15 = arith.constant 0 : index
    %c0_16 = arith.constant 0 : index
    %21 = vector.load %arg1[%c3, %c0_15, %c0_16] : memref<4x48x140xbf16, #tpu.memory_space<vmem>>, vector<1x48x140xbf16>
    %22 = vector.shape_cast %21 : vector<1x48x140xbf16> to vector<48x140xbf16>
    %cst_17 = arith.constant dense<0.000000e+00> : vector<48x256xf32>
    %23 = tpu.matmul %22, %0, %cst_17 {dimension_numbers = #tpu.dot_dimension_numbers<[1], [0], [0], [1], [0, 0, 1, 1], [], []>} : vector<48x140xbf16>, vector<140x256xbf16>, vector<48x256xf32> -> vector<48x256xf32>
    %24 = arith.maximumf %20, %23 : vector<48x256xf32>
    %25 = vector.extract_strided_slice %24 {offsets = [0, 0], sizes = [48, 128], strides = [1, 1]} : vector<48x256xf32> to vector<48x128xf32>
    %26 = vector.extract_strided_slice %24 {offsets = [0, 128], sizes = [48, 128], strides = [1, 1]} : vector<48x256xf32> to vector<48x128xf32>
    %27 = arith.maximumf %25, %26 : vector<48x128xf32>
    %28 = vector.broadcast %1 : vector<1x128xf32> to vector<48x128xf32>
    %29 = arith.addf %27, %28 : vector<48x128xf32>
    %cst_18 = arith.constant 0.000000e+00 : f32
    %30 = vector.broadcast %cst_18 : f32 to vector<48x128xf32>
    %31 = arith.maximumf %29, %30 : vector<48x128xf32>
    %32 = arith.truncf %31 : vector<48x128xf32> to vector<48x128xbf16>
    %c0_19 = arith.constant 0 : index
    %c0_20 = arith.constant 0 : index
    %33 = vector.load %arg12[%c0_19, %c0_20] : memref<48x128xbf16, #tpu.memory_space<vmem>>, vector<48x128xbf16>
    tpu.vector_store %arg12[%c0_19, %c0_20], %32 {strides = array<i32>} : memref<48x128xbf16, #tpu.memory_space<vmem>>, vector<48x128xbf16>,
    %c0_21 = arith.constant 0 : index
    %c0_22 = arith.constant 0 : index
    %c0_23 = arith.constant 0 : index
    %34 = vector.load %arg4[%c0_21, %c0_22, %c0_23] : memref<5x128x256xbf16, #tpu.memory_space<vmem>>, vector<1x128x256xbf16>
    %35 = vector.shape_cast %34 : vector<1x128x256xbf16> to vector<128x256xbf16>
    %c0_24 = arith.constant 0 : index
    %c0_25 = arith.constant 0 : index
    %36 = vector.load %arg11[%c0_24, %c0_25] : memref<48x128xbf16, #tpu.memory_space<vmem>>, vector<32x128xbf16>
    %cst_26 = arith.constant dense<0.000000e+00> : vector<32x256xf32>
    %37 = tpu.matmul %36, %35, %cst_26 {dimension_numbers = #tpu.dot_dimension_numbers<[1], [0], [0], [1], [0, 0, 1, 1], [], []>} : vector<32x128xbf16>, vector<128x256xbf16>, vector<32x256xf32> -> vector<32x256xf32>
    %c0_27 = arith.constant 0 : index
    %c0_28 = arith.constant 0 : index
    %38 = vector.load %arg12[%c0_27, %c0_28] : memref<48x128xbf16, #tpu.memory_space<vmem>>, vector<32x128xbf16>
    %cst_29 = arith.constant dense<0.000000e+00> : vector<32x256xf32>
    %39 = tpu.matmul %38, %35, %cst_29 {dimension_numbers = #tpu.dot_dimension_numbers<[1], [0], [0], [1], [0, 0, 1, 1], [], []>} : vector<32x128xbf16>, vector<128x256xbf16>, vector<32x256xf32> -> vector<32x256xf32>
    %c1_30 = arith.constant 1 : index
    %c0_31 = arith.constant 0 : index
    %c0_32 = arith.constant 0 : index
    %40 = vector.load %arg4[%c1_30, %c0_31, %c0_32] : memref<5x128x256xbf16, #tpu.memory_space<vmem>>, vector<1x128x256xbf16>
    %41 = vector.shape_cast %40 : vector<1x128x256xbf16> to vector<128x256xbf16>
    %c0_33 = arith.constant 0 : index
    %c0_34 = arith.constant 0 : index
    %42 = vector.load %arg12[%c0_33, %c0_34] : memref<48x128xbf16, #tpu.memory_space<vmem>>, vector<32x128xbf16>
    %cst_35 = arith.constant dense<0.000000e+00> : vector<32x256xf32>
    %43 = tpu.matmul %42, %41, %cst_35 {dimension_numbers = #tpu.dot_dimension_numbers<[1], [0], [0], [1], [0, 0, 1, 1], [], []>} : vector<32x128xbf16>, vector<128x256xbf16>, vector<32x256xf32> -> vector<32x256xf32>
    %44 = arith.addf %37, %43 : vector<32x256xf32>
    %c8 = arith.constant 8 : index
    %c0_36 = arith.constant 0 : index
    %45 = vector.load %arg11[%c8, %c0_36] : memref<48x128xbf16, #tpu.memory_space<vmem>>, vector<32x128xbf16>
    %cst_37 = arith.constant dense<0.000000e+00> : vector<32x256xf32>
    %46 = tpu.matmul %45, %41, %cst_37 {dimension_numbers = #tpu.dot_dimension_numbers<[1], [0], [0], [1], [0, 0, 1, 1], [], []>} : vector<32x128xbf16>, vector<128x256xbf16>, vector<32x256xf32> -> vector<32x256xf32>
    %47 = arith.addf %39, %46 : vector<32x256xf32>
    %c2_38 = arith.constant 2 : index
    %c0_39 = arith.constant 0 : index
    %c0_40 = arith.constant 0 : index
    %48 = vector.load %arg4[%c2_38, %c0_39, %c0_40] : memref<5x128x256xbf16, #tpu.memory_space<vmem>>, vector<1x128x256xbf16>
    %49 = vector.shape_cast %48 : vector<1x128x256xbf16> to vector<128x256xbf16>
    %c8_41 = arith.constant 8 : index
    %c0_42 = arith.constant 0 : index
    %50 = vector.load %arg11[%c8_41, %c0_42] : memref<48x128xbf16, #tpu.memory_space<vmem>>, vector<32x128xbf16>
    %cst_43 = arith.constant dense<0.000000e+00> : vector<32x256xf32>
    %51 = tpu.matmul %50, %49, %cst_43 {dimension_numbers = #tpu.dot_dimension_numbers<[1], [0], [0], [1], [0, 0, 1, 1], [], []>} : vector<32x128xbf16>, vector<128x256xbf16>, vector<32x256xf32> -> vector<32x256xf32>
    %52 = arith.addf %44, %51 : vector<32x256xf32>
    %c8_44 = arith.constant 8 : index
    %c0_45 = arith.constant 0 : index
    %53 = vector.load %arg12[%c8_44, %c0_45] : memref<48x128xbf16, #tpu.memory_space<vmem>>, vector<32x128xbf16>
    %cst_46 = arith.constant dense<0.000000e+00> : vector<32x256xf32>
    %54 = tpu.matmul %53, %49, %cst_46 {dimension_numbers = #tpu.dot_dimension_numbers<[1], [0], [0], [1], [0, 0, 1, 1], [], []>} : vector<32x128xbf16>, vector<128x256xbf16>, vector<32x256xf32> -> vector<32x256xf32>
    %55 = arith.addf %47, %54 : vector<32x256xf32>
    %c3_47 = arith.constant 3 : index
    %c0_48 = arith.constant 0 : index
    %c0_49 = arith.constant 0 : index
    %56 = vector.load %arg4[%c3_47, %c0_48, %c0_49] : memref<5x128x256xbf16, #tpu.memory_space<vmem>>, vector<1x128x256xbf16>
    %57 = vector.shape_cast %56 : vector<1x128x256xbf16> to vector<128x256xbf16>
    %c8_50 = arith.constant 8 : index
    %c0_51 = arith.constant 0 : index
    %58 = vector.load %arg12[%c8_50, %c0_51] : memref<48x128xbf16, #tpu.memory_space<vmem>>, vector<32x128xbf16>
    %cst_52 = arith.constant dense<0.000000e+00> : vector<32x256xf32>
    %59 = tpu.matmul %58, %57, %cst_52 {dimension_numbers = #tpu.dot_dimension_numbers<[1], [0], [0], [1], [0, 0, 1, 1], [], []>} : vector<32x128xbf16>, vector<128x256xbf16>, vector<32x256xf32> -> vector<32x256xf32>
    %60 = arith.addf %52, %59 : vector<32x256xf32>
    %c16 = arith.constant 16 : index
    %c0_53 = arith.constant 0 : index
    %61 = vector.load %arg11[%c16, %c0_53] : memref<48x128xbf16, #tpu.memory_space<vmem>>, vector<32x128xbf16>
    %cst_54 = arith.constant dense<0.000000e+00> : vector<32x256xf32>
    %62 = tpu.matmul %61, %57, %cst_54 {dimension_numbers = #tpu.dot_dimension_numbers<[1], [0], [0], [1], [0, 0, 1, 1], [], []>} : vector<32x128xbf16>, vector<128x256xbf16>, vector<32x256xf32> -> vector<32x256xf32>
    %63 = arith.addf %55, %62 : vector<32x256xf32>
    %c4 = arith.constant 4 : index
    %c0_55 = arith.constant 0 : index
    %c0_56 = arith.constant 0 : index
    %64 = vector.load %arg4[%c4, %c0_55, %c0_56] : memref<5x128x256xbf16, #tpu.memory_space<vmem>>, vector<1x128x256xbf16>
    %65 = vector.shape_cast %64 : vector<1x128x256xbf16> to vector<128x256xbf16>
    %c16_57 = arith.constant 16 : index
    %c0_58 = arith.constant 0 : index
    %66 = vector.load %arg11[%c16_57, %c0_58] : memref<48x128xbf16, #tpu.memory_space<vmem>>, vector<32x128xbf16>
    %cst_59 = arith.constant dense<0.000000e+00> : vector<32x256xf32>
    %67 = tpu.matmul %66, %65, %cst_59 {dimension_numbers = #tpu.dot_dimension_numbers<[1], [0], [0], [1], [0, 0, 1, 1], [], []>} : vector<32x128xbf16>, vector<128x256xbf16>, vector<32x256xf32> -> vector<32x256xf32>
    %68 = arith.addf %60, %67 : vector<32x256xf32>
    %c16_60 = arith.constant 16 : index
    %c0_61 = arith.constant 0 : index
    %69 = vector.load %arg12[%c16_60, %c0_61] : memref<48x128xbf16, #tpu.memory_space<vmem>>, vector<32x128xbf16>
    %cst_62 = arith.constant dense<0.000000e+00> : vector<32x256xf32>
    %70 = tpu.matmul %69, %65, %cst_62 {dimension_numbers = #tpu.dot_dimension_numbers<[1], [0], [0], [1], [0, 0, 1, 1], [], []>} : vector<32x128xbf16>, vector<128x256xbf16>, vector<32x256xf32> -> vector<32x256xf32>
    %71 = arith.addf %63, %70 : vector<32x256xf32>
    %72 = arith.maximumf %68, %71 : vector<32x256xf32>
    %73 = vector.extract_strided_slice %72 {offsets = [0, 0], sizes = [32, 128], strides = [1, 1]} : vector<32x256xf32> to vector<32x128xf32>
    %74 = vector.extract_strided_slice %72 {offsets = [0, 128], sizes = [32, 128], strides = [1, 1]} : vector<32x256xf32> to vector<32x128xf32>
    %75 = arith.maximumf %73, %74 : vector<32x128xf32>
    %c0_63 = arith.constant 0 : index
    %c0_64 = arith.constant 0 : index
    %76 = vector.load %arg5[%c0_63, %c0_64] : memref<1x128xf32, #tpu.memory_space<vmem>>, vector<1x128xf32>
    %77 = vector.broadcast %76 : vector<1x128xf32> to vector<32x128xf32>
    %78 = arith.addf %75, %77 : vector<32x128xf32>
    %cst_65 = arith.constant 0.000000e+00 : f32
    %79 = vector.broadcast %cst_65 : f32 to vector<32x128xf32>
    %80 = arith.maximumf %78, %79 : vector<32x128xf32>
    %81 = arith.truncf %80 : vector<32x128xf32> to vector<32x128xbf16>
    %c0_66 = arith.constant 0 : index
    %c0_67 = arith.constant 0 : index
    %82 = vector.load %arg13[%c0_66, %c0_67] : memref<32x128xbf16, #tpu.memory_space<vmem>>, vector<32x128xbf16>
    tpu.vector_store %arg13[%c0_66, %c0_67], %81 {strides = array<i32>} : memref<32x128xbf16, #tpu.memory_space<vmem>>, vector<32x128xbf16>,
    %c0_68 = arith.constant 0 : index
    %c0_69 = arith.constant 0 : index
    %83 = vector.load %arg13[%c0_68, %c0_69] : memref<32x128xbf16, #tpu.memory_space<vmem>>, vector<8x128xbf16>
    %c0_70 = arith.constant 0 : index
    %c0_71 = arith.constant 0 : index
    %c0_72 = arith.constant 0 : index
    %84 = vector.load %arg6[%c0_70, %c0_71, %c0_72] : memref<4x128x128xbf16, #tpu.memory_space<vmem>>, vector<1x128x128xbf16>
    %85 = vector.shape_cast %84 : vector<1x128x128xbf16> to vector<128x128xbf16>
    %cst_73 = arith.constant dense<0.000000e+00> : vector<8x128xf32>
    %86 = tpu.matmul %83, %85, %cst_73 {dimension_numbers = #tpu.dot_dimension_numbers<[1], [0], [0], [1], [0, 0, 1, 1], [], []>} : vector<8x128xbf16>, vector<128x128xbf16>, vector<8x128xf32> -> vector<8x128xf32>
    %c8_74 = arith.constant 8 : index
    %c0_75 = arith.constant 0 : index
    %87 = vector.load %arg13[%c8_74, %c0_75] : memref<32x128xbf16, #tpu.memory_space<vmem>>, vector<8x128xbf16>
    %c1_76 = arith.constant 1 : index
    %c0_77 = arith.constant 0 : index
    %c0_78 = arith.constant 0 : index
    %88 = vector.load %arg6[%c1_76, %c0_77, %c0_78] : memref<4x128x128xbf16, #tpu.memory_space<vmem>>, vector<1x128x128xbf16>
    %89 = vector.shape_cast %88 : vector<1x128x128xbf16> to vector<128x128xbf16>
    %cst_79 = arith.constant dense<0.000000e+00> : vector<8x128xf32>
    %90 = tpu.matmul %87, %89, %cst_79 {dimension_numbers = #tpu.dot_dimension_numbers<[1], [0], [0], [1], [0, 0, 1, 1], [], []>} : vector<8x128xbf16>, vector<128x128xbf16>, vector<8x128xf32> -> vector<8x128xf32>
    %91 = arith.addf %86, %90 : vector<8x128xf32>
    %c16_80 = arith.constant 16 : index
    %c0_81 = arith.constant 0 : index
    %92 = vector.load %arg13[%c16_80, %c0_81] : memref<32x128xbf16, #tpu.memory_space<vmem>>, vector<8x128xbf16>
    %c2_82 = arith.constant 2 : index
    %c0_83 = arith.constant 0 : index
    %c0_84 = arith.constant 0 : index
    %93 = vector.load %arg6[%c2_82, %c0_83, %c0_84] : memref<4x128x128xbf16, #tpu.memory_space<vmem>>, vector<1x128x128xbf16>
    %94 = vector.shape_cast %93 : vector<1x128x128xbf16> to vector<128x128xbf16>
    %cst_85 = arith.constant dense<0.000000e+00> : vector<8x128xf32>
    %95 = tpu.matmul %92, %94, %cst_85 {dimension_numbers = #tpu.dot_dimension_numbers<[1], [0], [0], [1], [0, 0, 1, 1], [], []>} : vector<8x128xbf16>, vector<128x128xbf16>, vector<8x128xf32> -> vector<8x128xf32>
    %96 = arith.addf %91, %95 : vector<8x128xf32>
    %c24 = arith.constant 24 : index
    %c0_86 = arith.constant 0 : index
    %97 = vector.load %arg13[%c24, %c0_86] : memref<32x128xbf16, #tpu.memory_space<vmem>>, vector<8x128xbf16>
    %c3_87 = arith.constant 3 : index
    %c0_88 = arith.constant 0 : index
    %c0_89 = arith.constant 0 : index
    %98 = vector.load %arg6[%c3_87, %c0_88, %c0_89] : memref<4x128x128xbf16, #tpu.memory_space<vmem>>, vector<1x128x128xbf16>
    %99 = vector.shape_cast %98 : vector<1x128x128xbf16> to vector<128x128xbf16>
    %cst_90 = arith.constant dense<0.000000e+00> : vector<8x128xf32>
    %100 = tpu.matmul %97, %99, %cst_90 {dimension_numbers = #tpu.dot_dimension_numbers<[1], [0], [0], [1], [0, 0, 1, 1], [], []>} : vector<8x128xbf16>, vector<128x128xbf16>, vector<8x128xf32> -> vector<8x128xf32>
    %101 = arith.addf %96, %100 : vector<8x128xf32>
    %c0_91 = arith.constant 0 : index
    %c0_92 = arith.constant 0 : index
    %102 = vector.load %arg7[%c0_91, %c0_92] : memref<1x128xf32, #tpu.memory_space<vmem>>, vector<1x128xf32>
    %103 = vector.broadcast %102 : vector<1x128xf32> to vector<8x128xf32>
    %104 = arith.addf %101, %103 : vector<8x128xf32>
    %cst_93 = arith.constant 0.000000e+00 : f32
    %105 = vector.broadcast %cst_93 : f32 to vector<8x128xf32>
    %106 = arith.maximumf %104, %105 : vector<8x128xf32>
    %107 = arith.truncf %106 : vector<8x128xf32> to vector<8x128xbf16>
    %c0_94 = arith.constant 0 : index
    %c0_95 = arith.constant 0 : index
    %108 = vector.load %arg8[%c0_94, %c0_95] : memref<128x128xbf16, #tpu.memory_space<vmem>>, vector<128x128xbf16>
    %cst_96 = arith.constant dense<0.000000e+00> : vector<8x128xf32>
    %109 = tpu.matmul %107, %108, %cst_96 {dimension_numbers = #tpu.dot_dimension_numbers<[1], [0], [0], [1], [0, 0, 1, 1], [], []>} : vector<8x128xbf16>, vector<128x128xbf16>, vector<8x128xf32> -> vector<8x128xf32>
    %c0_97 = arith.constant 0 : index
    %c0_98 = arith.constant 0 : index
    %110 = vector.load %arg9[%c0_97, %c0_98] : memref<1x128xf32, #tpu.memory_space<vmem>>, vector<1x128xf32>
    %111 = vector.broadcast %110 : vector<1x128xf32> to vector<8x128xf32>
    %112 = arith.addf %109, %111 : vector<8x128xf32>
    %cst_99 = arith.constant dense<0xFF800000> : vector<8xf32>
    %113 = vector.multi_reduction <maximumf>, %112, %cst_99 [1] : vector<8x128xf32> to vector<8xf32>
    %114 = vector.shape_cast %113 : vector<8xf32> to vector<8x1xf32>
    %115 = vector.broadcast %114 : vector<8x1xf32> to vector<8x128xf32>
    %116 = arith.subf %112, %115 : vector<8x128xf32>
    %117 = math.exp %116 : vector<8x128xf32>
    %cst_100 = arith.constant dense<0.000000e+00> : vector<8xf32>
    %118 = vector.multi_reduction <add>, %117, %cst_100 [1] : vector<8x128xf32> to vector<8xf32>
    %119 = vector.shape_cast %118 : vector<8xf32> to vector<8x1xf32>
    %120 = math.log %119 : vector<8x1xf32>
    %121 = vector.broadcast %120 : vector<8x1xf32> to vector<8x128xf32>
    %122 = arith.subf %116, %121 : vector<8x128xf32>
    %c0_101 = arith.constant 0 : index
    %c0_102 = arith.constant 0 : index
    %123 = vector.load %arg10[%c0_101, %c0_102] : memref<8x128xf32, #tpu.memory_space<vmem>>, vector<8x128xf32>
    tpu.vector_store %arg10[%c0_101, %c0_102], %122 {strides = array<i32>} : memref<8x128xf32, #tpu.memory_space<vmem>>, vector<8x128xf32>,
    return
  }
  func.func @transform_0(%arg0: i32) -> (i32, i32, i32) {
    %c0_i32 = arith.constant 0 : i32
    %c0_i32_0 = arith.constant 0 : i32
    %c0_i32_1 = arith.constant 0 : i32
    return %arg0, %c0_i32, %c0_i32_0 : i32, i32, i32
  }
  func.func @transform_1(%arg0: i32) -> (i32, i32) {
    %c0_i32 = arith.constant 0 : i32
    %c0_i32_0 = arith.constant 0 : i32
    %c0_i32_1 = arith.constant 0 : i32
    return %c0_i32, %c0_i32_0 : i32, i32
  }
  func.func @transform_2(%arg0: i32) -> (i32, i32) {
    %c0_i32 = arith.constant 0 : i32
    %c0_i32_0 = arith.constant 0 : i32
    %c0_i32_1 = arith.constant 0 : i32
    return %c0_i32, %c0_i32_0 : i32, i32
  }
  func.func @transform_3(%arg0: i32) -> (i32, i32, i32) {
    %c0_i32 = arith.constant 0 : i32
    %c0_i32_0 = arith.constant 0 : i32
    %c0_i32_1 = arith.constant 0 : i32
    %c0_i32_2 = arith.constant 0 : i32
    return %c0_i32, %c0_i32_0, %c0_i32_1 : i32, i32, i32
  }
  func.func @transform_4(%arg0: i32) -> (i32, i32) {
    %c0_i32 = arith.constant 0 : i32
    %c0_i32_0 = arith.constant 0 : i32
    %c0_i32_1 = arith.constant 0 : i32
    return %c0_i32, %c0_i32_0 : i32, i32
  }
  func.func @transform_5(%arg0: i32) -> (i32, i32, i32) {
    %c0_i32 = arith.constant 0 : i32
    %c0_i32_0 = arith.constant 0 : i32
    %c0_i32_1 = arith.constant 0 : i32
    %c0_i32_2 = arith.constant 0 : i32
    return %c0_i32, %c0_i32_0, %c0_i32_1 : i32, i32, i32
  }
  func.func @transform_6(%arg0: i32) -> (i32, i32) {
    %c0_i32 = arith.constant 0 : i32
    %c0_i32_0 = arith.constant 0 : i32
    %c0_i32_1 = arith.constant 0 : i32
    return %c0_i32, %c0_i32_0 : i32, i32
  }
  func.func @transform_7(%arg0: i32) -> (i32, i32) {
    %c0_i32 = arith.constant 0 : i32
    %c0_i32_0 = arith.constant 0 : i32
    %c0_i32_1 = arith.constant 0 : i32
    return %c0_i32, %c0_i32_0 : i32, i32
  }
  func.func @transform_8(%arg0: i32) -> (i32, i32) {
    %c0_i32 = arith.constant 0 : i32
    %c0_i32_0 = arith.constant 0 : i32
    %c0_i32_1 = arith.constant 0 : i32
    return %c0_i32, %c0_i32_0 : i32, i32
  }
  func.func @transform_9(%arg0: i32) -> (i32, i32) {
    %c0_i32 = arith.constant 0 : i32
    %c0_i32_0 = arith.constant 0 : i32
    return %arg0, %c0_i32 : i32, i32
  }
}

</mosaic_0001>

<llo_original>
// kernel: tile.19
$region0: #{tile.19}
  %s0 = inlined_call_operand.vmem [shape: f32[4,20], index: 0, kind: input, shape index: {}]
  %s1 = inlined_call_operand.vmem [shape: f32[80], index: 1, kind: output, shape index: {}]
  $region1: #{tile.19} parent=0
    #allocation0 [shape = 'u8[4096]{0}', space=vmem, size = 0x1000, scoped, tag = 'scoped mem for output reshape']
    #allocation1 [shape = 'u8[4096]{0}', space=vmem, size = 0x1000, scoped, tag = 'scoped mem for input reshape']
    %s3 = sshllo.u32 0, 4
    %v4 = vld [vmem:[%s0] sm:%s3]
    %5 = vst [vmem:[#allocation1] sm:%s3] %v4
    %v6 = vld [vmem:[#allocation1] sm:$0x1]
    %vm7 = vcmask 162816
    %8 = vst.msk [vmem:[#allocation0] sm:$0x1] %vm7, %v6
    %s9 = scalar_lea.vmem [#allocation1], 3
    %v10 = vld [vmem:[%s9] sm:$0x1]
    %11 = vrot.lane.b32.xlu0 %v10, 60
    %v12 = vpop.permute.xlu0 %11
    %vm13 = vcmask 654816
    %14 = vst.msk [vmem:[#allocation0] sm:$0x1] %vm13, %v12
    %s15 = scalar_lea.vmem [#allocation1], 2
    %v16 = vld [vmem:[%s15] sm:$0x1]
    %17 = vrot.lane.b32.xlu0 %v16, 40
    %v18 = vpop.permute.xlu0 %17
    %vm19 = vcmask 490816
    %20 = vst.msk [vmem:[#allocation0] sm:$0x1] %vm19, %v18
    %s21 = scalar_lea.vmem [#allocation1], 1
    %v22 = vld [vmem:[%s21] sm:$0x1]
    %23 = vrot.lane.b32.xlu0 %v22, 20
    %v24 = vpop.permute.xlu0 %23
    %vm25 = vcmask 326816
    %26 = vst.msk [vmem:[#allocation0] sm:$0x1] %vm25, %v24
    %s28 = sshllo.u32 0, 1
    %v30 = vld [vmem:[#allocation0] sm:%s28]
    %s31 = sshllo.u32 0, 1
    %32 = vst [vmem:[%s1] sm:%s31] %v30

// kernel: tile.14
$region0: #{tile.14}
  %s0 = inlined_call_operand.vmem [shape: f32[12,10], index: 0, kind: input, shape index: {}]
  %s1 = inlined_call_operand.vmem [shape: f32[120], index: 1, kind: output, shape index: {}]
  $region1: #{tile.14} parent=0
    #allocation0 [shape = 'u8[4096]{0}', space=vmem, size = 0x1000, scoped, tag = 'scoped mem for output reshape']
    %v2 = vld [vmem:[%s0] sm:$0x1]
    %vm3 = vcmask 80896
    %4 = vst.msk [vmem:[#allocation0] sm:$0x1] %vm3, %v2
    %s5 = scalar_lea.vmem %s0, 11
    %v6 = vld [vmem:[%s5] sm:$0x1]
    %7 = vrot.lane.b32.xlu0 %v6, 110
    %v8 = vpop.permute.xlu0 %7
    %vm9 = vcmask 982896
    %10 = vst.msk [vmem:[#allocation0] sm:$0x1] %vm9, %v8
    %s11 = scalar_lea.vmem %s0, 10
    %v12 = vld [vmem:[%s11] sm:$0x1]
    %13 = vrot.lane.b32.xlu0 %v12, 100
    %v14 = vpop.permute.xlu0 %13
    %vm15 = vcmask 900896
    %16 = vst.msk [vmem:[#allocation0] sm:$0x1] %vm15, %v14
    %s17 = scalar_lea.vmem %s0, 9
    %v18 = vld [vmem:[%s17] sm:$0x1]
    %19 = vrot.lane.b32.xlu0 %v18, 90
    %v20 = vpop.permute.xlu0 %19
    %vm21 = vcmask 818896
    %22 = vst.msk [vmem:[#allocation0] sm:$0x1] %vm21, %v20
    %s23 = scalar_lea.vmem %s0, 8
    %v24 = vld [vmem:[%s23] sm:$0x1]
    %25 = vrot.lane.b32.xlu0 %v24, 80
    %v26 = vpop.permute.xlu0 %25
    %vm27 = vcmask 736896
    %28 = vst.msk [vmem:[#allocation0] sm:$0x1] %vm27, %v26
    %s29 = scalar_lea.vmem %s0, 7
    %v30 = vld [vmem:[%s29] sm:$0x1]
    %31 = vrot.lane.b32.xlu0 %v30, 70
    %v32 = vpop.permute.xlu0 %31
    %vm33 = vcmask 654896
    %34 = vst.msk [vmem:[#allocation0] sm:$0x1] %vm33, %v32
    %s35 = scalar_lea.vmem %s0, 6
    %v36 = vld [vmem:[%s35] sm:$0x1]
    %37 = vrot.lane.b32.xlu0 %v36, 60
    %v38 = vpop.permute.xlu0 %37
    %vm39 = vcmask 572896
    %40 = vst.msk [vmem:[#allocation0] sm:$0x1] %vm39, %v38
    %s41 = scalar_lea.vmem %s0, 5
    %v42 = vld [vmem:[%s41] sm:$0x1]
    %43 = vrot.lane.b32.xlu0 %v42, 50
    %v44 = vpop.permute.xlu0 %43
    %vm45 = vcmask 490896
    %46 = vst.msk [vmem:[#allocation0] sm:$0x1] %vm45, %v44
    %s47 = scalar_lea.vmem %s0, 4
    %v48 = vld [vmem:[%s47] sm:$0x1]
    %49 = vrot.lane.b32.xlu0 %v48, 40
    %v50 = vpop.permute.xlu0 %49
    %vm51 = vcmask 408896
    %52 = vst.msk [vmem:[#allocation0] sm:$0x1] %vm51, %v50
    %s53 = scalar_lea.vmem %s0, 3
    %v54 = vld [vmem:[%s53] sm:$0x1]
    %55 = vrot.lane.b32.xlu0 %v54, 30
    %v56 = vpop.permute.xlu0 %55
    %vm57 = vcmask 326896
    %58 = vst.msk [vmem:[#allocation0] sm:$0x1] %vm57, %v56
    %s59 = scalar_lea.vmem %s0, 2
    %v60 = vld [vmem:[%s59] sm:$0x1]
    %61 = vrot.lane.b32.xlu0 %v60, 20
    %v62 = vpop.permute.xlu0 %61
    %vm63 = vcmask 244896
    %64 = vst.msk [vmem:[#allocation0] sm:$0x1] %vm63, %v62
    %s65 = scalar_lea.vmem %s0, 1
    %v66 = vld [vmem:[%s65] sm:$0x1]
    %67 = vrot.lane.b32.xlu0 %v66, 10
    %v68 = vpop.permute.xlu0 %67
    %vm69 = vcmask 162896
    %70 = vst.msk [vmem:[#allocation0] sm:$0x1] %vm69, %v68
    %s72 = sshllo.u32 0, 1
    %v74 = vld [vmem:[#allocation0] sm:%s72]
    %s75 = sshllo.u32 0, 1
    %76 = vst [vmem:[%s1] sm:%s75] %v74

// kernel: tile.13
$region0: #{tile.13}
  #allocation2 [shape = 's32[1]{0}', space=sflag, size = 0x4, scoped, tag = 'scoped memory for tile.13']
  %s0 = inlined_call_operand.hbm [shape: f32[10], index: 0, kind: input, shape index: {}]
  %s1 = inlined_call_operand.vmem [shape: f32[12,10], index: 1, kind: output, shape index: {}]
  $region1: #{tile.13} parent=0
    #allocation0 [shape = 'u8[512]{0}', space=vmem, size = 0x400, scoped, tag = 'operand span for operand 0']
    #allocation1 [shape = 's32[1]{0}', space=sflag, size = 0x4, scoped, tag = 'scoped memory for tile.13']
    %2 = vsyncpa [#allocation1], 0
    // Predicated region
    $region2: #{tile.13} parent=1 // pred_check
      _
    $region3: #{tile.13} parent=1 // pred_check_branch
      %4 = sbr.rel (0) target = $region5
    $region4: #{tile.13} parent=1 // pred_region
      %s6 = ssub.s32 16, 16
      %7 = vsyncadd [#allocation1], %s6
      %s9 = sshll.u32 [#allocation0], 4
      %s10 = int_to_ptr.vmem [resolvable:$true] %s9
      %12 = dma.hbm_to_vmem [thread:$0]  %s0, 16, %s10, [#allocation1]
    $region5: #{tile.13} parent=1 // pred_fallthru
      _
    // Predicated region
    $region6: #{tile.13} parent=1 // pred_check
      _
    $region7: #{tile.13} parent=1 // pred_check_branch
      %14 = sbr.rel (0) target = $region9
    $region8: #{tile.13} parent=1 // pred_region
      %15 = dma.done [#allocation1], 16
    $region9: #{tile.13} parent=1 // pred_fallthru
      _
    %v16 = vld [vmem:[#allocation0] ss:$0 sm:$0xff]
    %17 = vst [vmem:[%s1] sm:$0xff] %v16
    %s18 = scalar_lea.vmem %s1, 8
    %19 = vst [vmem:[%s18] sm:$0xff] %v16
    %20 = vsyncpa [#allocation1], 1

// kernel: tile.18
$region0: #{tile.18}
  #allocation2 [shape = 's32[1]{0}', space=sflag, size = 0x4, scoped, tag = 'scoped memory for tile.18']
  %s0 = inlined_call_operand.hbm [shape: f32[20], index: 0, kind: input, shape index: {}]
  %s1 = inlined_call_operand.vmem [shape: f32[4,20], index: 1, kind: output, shape index: {}]
  $region1: #{tile.18} parent=0
    #allocation0 [shape = 'u8[512]{0}', space=vmem, size = 0x400, scoped, tag = 'operand span for operand 0']
    #allocation1 [shape = 's32[1]{0}', space=sflag, size = 0x4, scoped, tag = 'scoped memory for tile.18']
    %2 = vsyncpa [#allocation1], 0
    // Predicated region
    $region2: #{tile.18} parent=1 // pred_check
      _
    $region3: #{tile.18} parent=1 // pred_check_branch
      %4 = sbr.rel (0) target = $region5
    $region4: #{tile.18} parent=1 // pred_region
      %s6 = ssub.s32 16, 16
      %7 = vsyncadd [#allocation1], %s6
      %s9 = sshll.u32 [#allocation0], 4
      %s10 = int_to_ptr.vmem [resolvable:$true] %s9
      %12 = dma.hbm_to_vmem [thread:$0]  %s0, 16, %s10, [#allocation1]
    $region5: #{tile.18} parent=1 // pred_fallthru
      _
    // Predicated region
    $region6: #{tile.18} parent=1 // pred_check
      _
    $region7: #{tile.18} parent=1 // pred_check_branch
      %14 = sbr.rel (0) target = $region9
    $region8: #{tile.18} parent=1 // pred_region
      %15 = dma.done [#allocation1], 16
    $region9: #{tile.18} parent=1 // pred_fallthru
      _
    %v16 = vld [vmem:[#allocation0] ss:$0 sm:$0xff]
    %17 = vst [vmem:[%s1] sm:$0xf] %v16
    %18 = vsyncpa [#allocation1], 1

// kernel: lenet_forward.1
$region0: #{lenet_forward.1}
  #allocation0 [shape = 'u32[]', space=smem, size = 0x4, offset = 0x4, fixed_abs, tag = 'smem constant byte address 0x4 - core index']
  #allocation1 [shape = 'u32[144,128]{1,0:T(1,128)}', space=vmem, size = 0x12000, scoped, tag = 'internal scratch']
  #allocation2 [shape = 'bf16[48,128]{1,0:T(16,128)(2,1)}', space=vmem, size = 0x3000, scoped, tag = 'scratch operand']
  #allocation3 [shape = 'bf16[48,128]{1,0:T(16,128)(2,1)}', space=vmem, size = 0x3000, scoped, tag = 'scratch operand']
  #allocation4 [shape = 'bf16[32,128]{1,0:T(16,128)(2,1)}', space=vmem, size = 0x2000, scoped, tag = 'scratch operand']
  %s0 = inlined_call_operand.vmem [shape: bf16[4,48,140], index: 0, kind: input, shape index: {}]
  %s1 = inlined_call_operand.vmem [shape: bf16[140,256], index: 1, kind: input, shape index: {}]
  %s2 = inlined_call_operand.vmem [shape: f32[1,128], index: 2, kind: input, shape index: {}]
  %s3 = inlined_call_operand.vmem [shape: bf16[5,128,256], index: 3, kind: input, shape index: {}]
  %s4 = inlined_call_operand.vmem [shape: f32[1,128], index: 4, kind: input, shape index: {}]
  %s5 = inlined_call_operand.vmem [shape: bf16[4,128,128], index: 5, kind: input, shape index: {}]
  %s6 = inlined_call_operand.vmem [shape: f32[1,128], index: 6, kind: input, shape index: {}]
  %s7 = inlined_call_operand.vmem [shape: bf16[128,128], index: 7, kind: input, shape index: {}]
  %s8 = inlined_call_operand.vmem [shape: f32[1,128], index: 8, kind: input, shape index: {}]
  %s9 = inlined_call_operand.vmem [shape: f32[8,128], index: 9, kind: output, shape index: {}]
  %s10 = sld [smem:[#allocation0]]
  $region46: #{lenet_forward.1} parent=0
    _
  %s12 = ssub.s32 1, %s10
  %s13 = scalar_select 0, %s12, %s10
  // Predicated region
  $region2: #{lenet_forward.1} parent=0 // pred_check
    _
  $region3: #{lenet_forward.1} parent=0 // pred_check_branch
    %15 = sbr.rel (0) target = $region5
  $region4: #{lenet_forward.1} parent=0 // pred_region
    _
  $region5: #{lenet_forward.1} parent=0 // pred_fallthru
    _
  // Predicated region
  $region6: #{lenet_forward.1} parent=0 // pred_check
    _
  $region7: #{lenet_forward.1} parent=0 // pred_check_branch
    %17 = sbr.rel (0) target = $region9
  $region8: #{lenet_forward.1} parent=0 // pred_region
    _
  $region9: #{lenet_forward.1} parent=0 // pred_fallthru
    _
  // Predicated region
  $region10: #{lenet_forward.1} parent=0 // pred_check
    _
  $region11: #{lenet_forward.1} parent=0 // pred_check_branch
    %19 = sbr.rel (0) target = $region13
  $region12: #{lenet_forward.1} parent=0 // pred_region
    _
  $region13: #{lenet_forward.1} parent=0 // pred_fallthru
    _
  // Predicated region
  $region14: #{lenet_forward.1} parent=0 // pred_check
    _
  $region15: #{lenet_forward.1} parent=0 // pred_check_branch
    %21 = sbr.rel (0) target = $region17
  $region16: #{lenet_forward.1} parent=0 // pred_region
    _
  $region17: #{lenet_forward.1} parent=0 // pred_fallthru
    _
  // Predicated region
  $region18: #{lenet_forward.1} parent=0 // pred_check
    _
  $region19: #{lenet_forward.1} parent=0 // pred_check_branch
    %23 = sbr.rel (0) target = $region21
  $region20: #{lenet_forward.1} parent=0 // pred_region
    _
  $region21: #{lenet_forward.1} parent=0 // pred_fallthru
    _
  // Predicated region
  $region22: #{lenet_forward.1} parent=0 // pred_check
    _
  $region23: #{lenet_forward.1} parent=0 // pred_check_branch
    %25 = sbr.rel (0) target = $region25
  $region24: #{lenet_forward.1} parent=0 // pred_region
    _
  $region25: #{lenet_forward.1} parent=0 // pred_fallthru
    _
  // Predicated region
  $region26: #{lenet_forward.1} parent=0 // pred_check
    _
  $region27: #{lenet_forward.1} parent=0 // pred_check_branch
    %27 = sbr.rel (0) target = $region29
  $region28: #{lenet_forward.1} parent=0 // pred_region
    _
  $region29: #{lenet_forward.1} parent=0 // pred_fallthru
    _
  // Predicated region
  $region30: #{lenet_forward.1} parent=0 // pred_check
    _
  $region31: #{lenet_forward.1} parent=0 // pred_check_branch
    %29 = sbr.rel (0) target = $region33
  $region32: #{lenet_forward.1} parent=0 // pred_region
    _
  $region33: #{lenet_forward.1} parent=0 // pred_fallthru
    _
  // Predicated region
  $region34: #{lenet_forward.1} parent=0 // pred_check
    _
  $region35: #{lenet_forward.1} parent=0 // pred_check_branch
    %31 = sbr.rel (0) target = $region37
  $region36: #{lenet_forward.1} parent=0 // pred_region
    _
  $region37: #{lenet_forward.1} parent=0 // pred_fallthru
    _
  %v33 = vld [vmem:[%s1] sm:$0xff]
  %v34 = vld [vmem:[%s1 + $0x8] sm:$0xff]
  %v35 = vld [vmem:[%s1 + $0x10] sm:$0xff]
  %v36 = vld [vmem:[%s1 + $0x18] sm:$0xff]
  %v37 = vld [vmem:[%s1 + $0x20] sm:$0xff]
  %v38 = vld [vmem:[%s1 + $0x28] sm:$0xff]
  %v39 = vld [vmem:[%s1 + $0x30] sm:$0xff]
  %v40 = vld [vmem:[%s1 + $0x38] sm:$0xff]
  %v41 = vld [vmem:[%s1 + $0x40] sm:$0xff]
  %v42 = vld [vmem:[%s1 + $0x48] sm:$0xff]
  %v43 = vld [vmem:[%s1 + $0x50] sm:$0xff]
  %v44 = vld [vmem:[%s1 + $0x58] sm:$0xff]
  %v45 = vld [vmem:[%s1 + $0x60] sm:$0xff]
  %v46 = vld [vmem:[%s1 + $0x68] sm:$0xff]
  %v47 = vld [vmem:[%s1 + $0x70] sm:$0xff]
  %v48 = vld [vmem:[%s1 + $0x78] sm:$0xff]
  %v49 = vld [vmem:[%s1 + $0x80] sm:$0xff]
  %v50 = vld [vmem:[%s1 + $0x88] sm:$0x33]
  %v51 = vld [vmem:[%s2] sm:$0x1]
  %v52 = vld [vmem:[%s0] sm:$0xff]
  %v53 = vld [vmem:[%s0 + $0x8] sm:$0xff]
  %v54 = vld [vmem:[%s0 + $0x10] sm:$0xff]
  %v55 = vld [vmem:[%s0 + $0x18] sm:$0xff]
  %v56 = vld [vmem:[%s0 + $0x20] sm:$0xff]
  %v57 = vld [vmem:[%s0 + $0x28] sm:$0xff]
  %v64 = vunpack.c.l.b16 %v52
  %v65 = vunpack.c.h.b16 %v52
  %v66 = vunpack.c.l.b16 %v53
  %v67 = vunpack.c.h.b16 %v53
  %v68 = vunpack.c.l.b16 %v54
  %v69 = vunpack.c.h.b16 %v54
  %v70 = vunpack.c.l.b16 %v55
  %v71 = vunpack.c.h.b16 %v55
  %v72 = vunpack.c.l.b16 %v56
  %v73 = vunpack.c.h.b16 %v56
  %v74 = vunpack.c.l.b16 %v57
  %v75 = vunpack.c.h.b16 %v57
  %v76 = vpack.c.b16 %v66, %v64
  %v77 = vpack.c.b16 %v67, %v65
  %v78 = vpack.c.b16 %v70, %v68
  %v79 = vpack.c.b16 %v71, %v69
  %v80 = vpack.c.b16 %v74, %v72
  %v81 = vpack.c.b16 %v75, %v73
  %v103 = vunpack.c.l.b16 %v33
  %v104 = vunpack.c.h.b16 %v33
  %v105 = vunpack.c.l.b16 %v34
  %v106 = vunpack.c.h.b16 %v34
  %v107 = vunpack.c.l.b16 %v35
  %v108 = vunpack.c.h.b16 %v35
  %v109 = vunpack.c.l.b16 %v36
  %v110 = vunpack.c.h.b16 %v36
  %v111 = vunpack.c.l.b16 %v37
  %v112 = vunpack.c.h.b16 %v37
  %v113 = vunpack.c.l.b16 %v38
  %v114 = vunpack.c.h.b16 %v38
  %v115 = vunpack.c.l.b16 %v39
  %v116 = vunpack.c.h.b16 %v39
  %v117 = vunpack.c.l.b16 %v40
  %v118 = vunpack.c.h.b16 %v40
  %v119 = vunpack.c.l.b16 %v41
  %v120 = vunpack.c.h.b16 %v41
  %v121 = vunpack.c.l.b16 %v42
  %v122 = vunpack.c.h.b16 %v42
  %v123 = vunpack.c.l.b16 %v43
  %v124 = vunpack.c.h.b16 %v43
  %v125 = vunpack.c.l.b16 %v44
  %v126 = vunpack.c.h.b16 %v44
  %v127 = vunpack.c.l.b16 %v45
  %v128 = vunpack.c.h.b16 %v45
  %v129 = vunpack.c.l.b16 %v46
  %v130 = vunpack.c.h.b16 %v46
  %v131 = vunpack.c.l.b16 %v47
  %v132 = vunpack.c.h.b16 %v47
  %v133 = vunpack.c.l.b16 %v48
  %v134 = vunpack.c.h.b16 %v48
  %v135 = vunpack.c.l.b16 %v49
  %v136 = vunpack.c.h.b16 %v49
  %v137 = vunpack.c.l.b16 %v50
  %v138 = vunpack.c.h.b16 %v50
  %v139 = vpack.c.b16 %v105, %v103
  %v140 = vpack.c.b16 %v106, %v104
  %v141 = vpack.c.b16 %v109, %v107
  %v142 = vpack.c.b16 %v110, %v108
  %v143 = vpack.c.b16 %v113, %v111
  %v144 = vpack.c.b16 %v114, %v112
  %v145 = vpack.c.b16 %v117, %v115
  %v146 = vpack.c.b16 %v118, %v116
  %v147 = vpack.c.b16 %v121, %v119
  %v148 = vpack.c.b16 %v122, %v120
  %v149 = vpack.c.b16 %v125, %v123
  %v150 = vpack.c.b16 %v126, %v124
  %v151 = vpack.c.b16 %v129, %v127
  %v152 = vpack.c.b16 %v130, %v128
  %v153 = vpack.c.b16 %v133, %v131
  %v154 = vpack.c.b16 %v134, %v132
  %v155 = vpack.c.b16 %v137, %v135
  %v156 = vpack.c.b16 %v138, %v136
  %vm173 = vcmask 97280
  %v175 = vsel %vm173, %v77, 0
  %v178 = vsel %vm173, %v79, 0
  %v181 = vsel %vm173, %v81, 0
  %vm183 = vcmask 1045504
  %v185 = vsel %vm183, %v155, 0
  %v188 = vsel %vm183, %v156, 0
  %190 = vmatprep.subr.bf16.mxu0 %v140
  %191 = vmatpush1.bf16.msra.mxu0 %v139
  %192 = vmatprep.subr.bf16.mxu0 %v142
  %193 = vmatpush1.bf16.msra.mxu0 %v141
  %194 = vmatprep.subr.bf16.mxu0 %v144
  %195 = vmatpush1.bf16.msra.mxu0 %v143
  %196 = vmatprep.subr.bf16.mxu0 %v146
  %197 = vmatpush1.bf16.msra.mxu0 %v145
  %198 = vmatprep.subr.bf16.mxu0 %v148
  %199 = vmatpush1.bf16.msra.mxu0 %v147
  %200 = vmatprep.subr.bf16.mxu0 %v150
  %201 = vmatpush1.bf16.msra.mxu0 %v149
  %202 = vmatprep.subr.bf16.mxu0 %v152
  %203 = vmatpush1.bf16.msra.mxu0 %v151
  %204 = vmatprep.subr.bf16.mxu0 %v154
  %205 = vmatpush1.bf16.msra.mxu0 %v153
  %206 = vmatprep.subr.bf16.mxu0 %v188
  %207 = vmatpush1.bf16.msra.mxu0 %v185
  %208 = vmatprep.subr.bf16.mxu0 0
  %209 = vmatpush1.bf16.msra.mxu0 0
  %210 = vmatprep.subr.bf16.mxu0 0
  %211 = vmatpush1.bf16.msra.mxu0 0
  %212 = vmatprep.subr.bf16.mxu0 0
  %213 = vmatpush1.bf16.msra.mxu0 0
  %214 = vmatprep.subr.bf16.mxu0 0
  %215 = vmatpush1.bf16.msra.mxu0 0
  %216 = vmatprep.subr.bf16.mxu0 0
  %217 = vmatpush1.bf16.msra.mxu0 0
  %218 = vmatprep.subr.bf16.mxu0 0
  %219 = vmatpush1.bf16.msra.mxu0 0
  %220 = vmatprep.subr.bf16.mxu0 0
  %221 = vmatpush1.bf16.msra.mxu0 0
  %222 = vmatprep.mubr.bf16.mxu0 %v175
  %223 = vmatmul.mubr.bf16.gmra.mrb[0].mxu0 %v76
  %v224 = vpop.f32.mrb[0].mxu0
  %v225 = vadd.f32 0.0, %v224
  %v226 = vpop.f32.mrb[0].mxu0
  %v227 = vadd.f32 0.0, %v226
  %v228 = vpop.f32.mrb[0].mxu0
  %v229 = vadd.f32 0.0, %v228
  %v230 = vpop.f32.mrb[0].mxu0
  %v231 = vadd.f32 0.0, %v230
  %232 = vmatprep.mubr.bf16.mxu0 %v178
  %233 = vmatmul.mubr.bf16.gmra.mrb[0].mxu0 %v78
  %v234 = vpop.f32.mrb[0].mxu0
  %v235 = vadd.f32 0.0, %v234
  %v236 = vpop.f32.mrb[0].mxu0
  %v237 = vadd.f32 0.0, %v236
  %v238 = vpop.f32.mrb[0].mxu0
  %v239 = vadd.f32 0.0, %v238
  %v240 = vpop.f32.mrb[0].mxu0
  %v241 = vadd.f32 0.0, %v240
  %242 = vmatprep.mubr.bf16.mxu0 %v181
  %243 = vmatmul.mubr.bf16.gmra.mrb[0].mxu0 %v80
  %v244 = vpop.f32.mrb[0].mxu0
  %v245 = vadd.f32 0.0, %v244
  %v246 = vpop.f32.mrb[0].mxu0
  %v247 = vadd.f32 0.0, %v246
  %v248 = vpop.f32.mrb[0].mxu0
  %v249 = vadd.f32 0.0, %v248
  %v250 = vpop.f32.mrb[0].mxu0
  %v251 = vadd.f32 0.0, %v250
  %252 = vdwg.mxu0
  %s253 = scalar_lea.vmem %s0, 48
  %v254 = vld [vmem:[%s253] sm:$0xff]
  %v255 = vld [vmem:[%s253 + $0x8] sm:$0xff]
  %v256 = vld [vmem:[%s253 + $0x10] sm:$0xff]
  %v257 = vld [vmem:[%s253 + $0x18] sm:$0xff]
  %v258 = vld [vmem:[%s253 + $0x20] sm:$0xff]
  %v259 = vld [vmem:[%s253 + $0x28] sm:$0xff]
  %v266 = vunpack.c.l.b16 %v254
  %v267 = vunpack.c.h.b16 %v254
  %v268 = vunpack.c.l.b16 %v255
  %v269 = vunpack.c.h.b16 %v255
  %v270 = vunpack.c.l.b16 %v256
  %v271 = vunpack.c.h.b16 %v256
  %v272 = vunpack.c.l.b16 %v257
  %v273 = vunpack.c.h.b16 %v257
  %v274 = vunpack.c.l.b16 %v258
  %v275 = vunpack.c.h.b16 %v258
  %v276 = vunpack.c.l.b16 %v259
  %v277 = vunpack.c.h.b16 %v259
  %v278 = vpack.c.b16 %v268, %v266
  %v279 = vpack.c.b16 %v269, %v267
  %v280 = vpack.c.b16 %v272, %v270
  %v281 = vpack.c.b16 %v273, %v271
  %v282 = vpack.c.b16 %v276, %v274
  %v283 = vpack.c.b16 %v277, %v275
  %v288 = vsel %vm173, %v279, 0
  %v291 = vsel %vm173, %v281, 0
  %v294 = vsel %vm173, %v283, 0
  %296 = vmatprep.subr.bf16.mxu0 %v140
  %297 = vmatpush1.bf16.msra.mxu0 %v139
  %298 = vmatprep.subr.bf16.mxu0 %v142
  %299 = vmatpush1.bf16.msra.mxu0 %v141
  %300 = vmatprep.subr.bf16.mxu0 %v144
  %301 = vmatpush1.bf16.msra.mxu0 %v143
  %302 = vmatprep.subr.bf16.mxu0 %v146
  %303 = vmatpush1.bf16.msra.mxu0 %v145
  %304 = vmatprep.subr.bf16.mxu0 %v148
  %305 = vmatpush1.bf16.msra.mxu0 %v147
  %306 = vmatprep.subr.bf16.mxu0 %v150
  %307 = vmatpush1.bf16.msra.mxu0 %v149
  %308 = vmatprep.subr.bf16.mxu0 %v152
  %309 = vmatpush1.bf16.msra.mxu0 %v151
  %310 = vmatprep.subr.bf16.mxu0 %v154
  %311 = vmatpush1.bf16.msra.mxu0 %v153
  %312 = vmatprep.subr.bf16.mxu0 %v188
  %313 = vmatpush1.bf16.msra.mxu0 %v185
  %314 = vmatprep.subr.bf16.mxu0 0
  %315 = vmatpush1.bf16.msra.mxu0 0
  %316 = vmatprep.subr.bf16.mxu0 0
  %317 = vmatpush1.bf16.msra.mxu0 0
  %318 = vmatprep.subr.bf16.mxu0 0
  %319 = vmatpush1.bf16.msra.mxu0 0
  %320 = vmatprep.subr.bf16.mxu0 0
  %321 = vmatpush1.bf16.msra.mxu0 0
  %322 = vmatprep.subr.bf16.mxu0 0
  %323 = vmatpush1.bf16.msra.mxu0 0
  %324 = vmatprep.subr.bf16.mxu0 0
  %325 = vmatpush1.bf16.msra.mxu0 0
  %326 = vmatprep.subr.bf16.mxu0 0
  %327 = vmatpush1.bf16.msra.mxu0 0
  %328 = vmatprep.mubr.bf16.mxu0 %v288
  %329 = vmatmul.mubr.bf16.gmra.mrb[0].mxu0 %v278
  %v330 = vpop.f32.mrb[0].mxu0
  %v331 = vadd.f32 0.0, %v330
  %v332 = vpop.f32.mrb[0].mxu0
  %v333 = vadd.f32 0.0, %v332
  %v334 = vpop.f32.mrb[0].mxu0
  %v335 = vadd.f32 0.0, %v334
  %v336 = vpop.f32.mrb[0].mxu0
  %v337 = vadd.f32 0.0, %v336
  %338 = vmatprep.mubr.bf16.mxu0 %v291
  %339 = vmatmul.mubr.bf16.gmra.mrb[0].mxu0 %v280
  %v340 = vpop.f32.mrb[0].mxu0
  %v341 = vadd.f32 0.0, %v340
  %v342 = vpop.f32.mrb[0].mxu0
  %v343 = vadd.f32 0.0, %v342
  %v344 = vpop.f32.mrb[0].mxu0
  %v345 = vadd.f32 0.0, %v344
  %v346 = vpop.f32.mrb[0].mxu0
  %v347 = vadd.f32 0.0, %v346
  %348 = vmatprep.mubr.bf16.mxu0 %v294
  %349 = vmatmul.mubr.bf16.gmra.mrb[0].mxu0 %v282
  %v350 = vpop.f32.mrb[0].mxu0
  %v351 = vadd.f32 0.0, %v350
  %v352 = vpop.f32.mrb[0].mxu0
  %v353 = vadd.f32 0.0, %v352
  %v354 = vpop.f32.mrb[0].mxu0
  %v355 = vadd.f32 0.0, %v354
  %v356 = vpop.f32.mrb[0].mxu0
  %v357 = vadd.f32 0.0, %v356
  %358 = vdwg.mxu0
  %v359 = vmax.f32 %v225, %v331
  %v360 = vmax.f32 %v227, %v333
  %v361 = vmax.f32 %v229, %v335
  %v362 = vmax.f32 %v231, %v337
  %v363 = vmax.f32 %v235, %v341
  %v364 = vmax.f32 %v237, %v343
  %v365 = vmax.f32 %v239, %v345
  %v366 = vmax.f32 %v241, %v347
  %v367 = vmax.f32 %v245, %v351
  %v368 = vmax.f32 %v247, %v353
  %v369 = vmax.f32 %v249, %v355
  %v370 = vmax.f32 %v251, %v357
  %v371 = vmax.f32 %v359, %v360
  %v372 = vmax.f32 %v361, %v362
  %v373 = vmax.f32 %v363, %v364
  %v374 = vmax.f32 %v365, %v366
  %v375 = vmax.f32 %v367, %v368
  %v376 = vmax.f32 %v369, %v370
  %v378 = vlaneseq
  %v379 = vshrl.u32 %v378, 7
  %v380 = vsub.s32 0, %v379
  %v381 = vrot.slane %v51, %v380
  %v383 = vadd.f32 %v371, %v381
  %v384 = vadd.f32 %v372, %v381
  %v385 = vadd.f32 %v373, %v381
  %v386 = vadd.f32 %v374, %v381
  %v387 = vadd.f32 %v375, %v381
  %v388 = vadd.f32 %v376, %v381
  %v389 = vmax.f32 %v383, 0.0
  %v390 = vmax.f32 %v384, 0.0
  %v391 = vmax.f32 %v385, 0.0
  %v392 = vmax.f32 %v386, 0.0
  %v393 = vmax.f32 %v387, 0.0
  %v394 = vmax.f32 %v388, 0.0
  %v395 = vpack.c.bf16 %v390, %v389
  %v396 = vpack.c.bf16 %v392, %v391
  %v397 = vpack.c.bf16 %v394, %v393
  %398 = vst [vmem:[#allocation2] sm:$0xff] %v395
  %399 = vst [vmem:[#allocation2 + $0x8] sm:$0xff] %v396
  %400 = vst [vmem:[#allocation2 + $0x10] sm:$0xff] %v397
  %s401 = scalar_lea.vmem %s0, 96
  %v402 = vld [vmem:[%s401] sm:$0xff]
  %v403 = vld [vmem:[%s401 + $0x8] sm:$0xff]
  %v404 = vld [vmem:[%s401 + $0x10] sm:$0xff]
  %v405 = vld [vmem:[%s401 + $0x18] sm:$0xff]
  %v406 = vld [vmem:[%s401 + $0x20] sm:$0xff]
  %v407 = vld [vmem:[%s401 + $0x28] sm:$0xff]
  %v414 = vunpack.c.l.b16 %v402
  %v415 = vunpack.c.h.b16 %v402
  %v416 = vunpack.c.l.b16 %v403
  %v417 = vunpack.c.h.b16 %v403
  %v418 = vunpack.c.l.b16 %v404
  %v419 = vunpack.c.h.b16 %v404
  %v420 = vunpack.c.l.b16 %v405
  %v421 = vunpack.c.h.b16 %v405
  %v422 = vunpack.c.l.b16 %v406
  %v423 = vunpack.c.h.b16 %v406
  %v424 = vunpack.c.l.b16 %v407
  %v425 = vunpack.c.h.b16 %v407
  %v426 = vpack.c.b16 %v416, %v414
  %v427 = vpack.c.b16 %v417, %v415
  %v428 = vpack.c.b16 %v420, %v418
  %v429 = vpack.c.b16 %v421, %v419
  %v430 = vpack.c.b16 %v424, %v422
  %v431 = vpack.c.b16 %v425, %v423
  %v436 = vsel %vm173, %v427, 0
  %v439 = vsel %vm173, %v429, 0
  %v442 = vsel %vm173, %v431, 0
  %444 = vmatprep.subr.bf16.mxu0 %v140
  %445 = vmatpush1.bf16.msra.mxu0 %v139
  %446 = vmatprep.subr.bf16.mxu0 %v142
  %447 = vmatpush1.bf16.msra.mxu0 %v141
  %448 = vmatprep.subr.bf16.mxu0 %v144
  %449 = vmatpush1.bf16.msra.mxu0 %v143
  %450 = vmatprep.subr.bf16.mxu0 %v146
  %451 = vmatpush1.bf16.msra.mxu0 %v145
  %452 = vmatprep.subr.bf16.mxu0 %v148
  %453 = vmatpush1.bf16.msra.mxu0 %v147
  %454 = vmatprep.subr.bf16.mxu0 %v150
  %455 = vmatpush1.bf16.msra.mxu0 %v149
  %456 = vmatprep.subr.bf16.mxu0 %v152
  %457 = vmatpush1.bf16.msra.mxu0 %v151
  %458 = vmatprep.subr.bf16.mxu0 %v154
  %459 = vmatpush1.bf16.msra.mxu0 %v153
  %460 = vmatprep.subr.bf16.mxu0 %v188
  %461 = vmatpush1.bf16.msra.mxu0 %v185
  %462 = vmatprep.subr.bf16.mxu0 0
  %463 = vmatpush1.bf16.msra.mxu0 0
  %464 = vmatprep.subr.bf16.mxu0 0
  %465 = vmatpush1.bf16.msra.mxu0 0
  %466 = vmatprep.subr.bf16.mxu0 0
  %467 = vmatpush1.bf16.msra.mxu0 0
  %468 = vmatprep.subr.bf16.mxu0 0
  %469 = vmatpush1.bf16.msra.mxu0 0
  %470 = vmatprep.subr.bf16.mxu0 0
  %471 = vmatpush1.bf16.msra.mxu0 0
  %472 = vmatprep.subr.bf16.mxu0 0
  %473 = vmatpush1.bf16.msra.mxu0 0
  %474 = vmatprep.subr.bf16.mxu0 0
  %475 = vmatpush1.bf16.msra.mxu0 0
  %476 = vmatprep.mubr.bf16.mxu0 %v436
  %477 = vmatmul.mubr.bf16.gmra.mrb[0].mxu0 %v426
  %v478 = vpop.f32.mrb[0].mxu0
  %v479 = vadd.f32 0.0, %v478
  %v480 = vpop.f32.mrb[0].mxu0
  %v481 = vadd.f32 0.0, %v480
  %v482 = vpop.f32.mrb[0].mxu0
  %v483 = vadd.f32 0.0, %v482
  %v484 = vpop.f32.mrb[0].mxu0
  %v485 = vadd.f32 0.0, %v484
  %486 = vmatprep.mubr.bf16.mxu0 %v439
  %487 = vmatmul.mubr.bf16.gmra.mrb[0].mxu0 %v428
  %v488 = vpop.f32.mrb[0].mxu0
  %v489 = vadd.f32 0.0, %v488
  %v490 = vpop.f32.mrb[0].mxu0
  %v491 = vadd.f32 0.0, %v490
  %v492 = vpop.f32.mrb[0].mxu0
  %v493 = vadd.f32 0.0, %v492
  %v494 = vpop.f32.mrb[0].mxu0
  %v495 = vadd.f32 0.0, %v494
  %496 = vmatprep.mubr.bf16.mxu0 %v442
  %497 = vmatmul.mubr.bf16.gmra.mrb[0].mxu0 %v430
  %v498 = vpop.f32.mrb[0].mxu0
  %v499 = vadd.f32 0.0, %v498
  %v500 = vpop.f32.mrb[0].mxu0
  %v501 = vadd.f32 0.0, %v500
  %v502 = vpop.f32.mrb[0].mxu0
  %v503 = vadd.f32 0.0, %v502
  %v504 = vpop.f32.mrb[0].mxu0
  %v505 = vadd.f32 0.0, %v504
  %506 = vdwg.mxu0
  %s507 = scalar_lea.vmem %s0, 144
  %v508 = vld [vmem:[%s507] sm:$0xff]
  %v509 = vld [vmem:[%s507 + $0x8] sm:$0xff]
  %v510 = vld [vmem:[%s507 + $0x10] sm:$0xff]
  %v511 = vld [vmem:[%s507 + $0x18] sm:$0xff]
  %v512 = vld [vmem:[%s507 + $0x20] sm:$0xff]
  %v513 = vld [vmem:[%s507 + $0x28] sm:$0xff]
  %v520 = vunpack.c.l.b16 %v508
  %v521 = vunpack.c.h.b16 %v508
  %v522 = vunpack.c.l.b16 %v509
  %v523 = vunpack.c.h.b16 %v509
  %v524 = vunpack.c.l.b16 %v510
  %v525 = vunpack.c.h.b16 %v510
  %v526 = vunpack.c.l.b16 %v511
  %v527 = vunpack.c.h.b16 %v511
  %v528 = vunpack.c.l.b16 %v512
  %v529 = vunpack.c.h.b16 %v512
  %v530 = vunpack.c.l.b16 %v513
  %v531 = vunpack.c.h.b16 %v513
  %v532 = vpack.c.b16 %v522, %v520
  %v533 = vpack.c.b16 %v523, %v521
  %v534 = vpack.c.b16 %v526, %v524
  %v535 = vpack.c.b16 %v527, %v525
  %v536 = vpack.c.b16 %v530, %v528
  %v537 = vpack.c.b16 %v531, %v529
  %v542 = vsel %vm173, %v533, 0
  %v545 = vsel %vm173, %v535, 0
  %v548 = vsel %vm173, %v537, 0
  %550 = vmatprep.subr.bf16.mxu0 %v140
  %551 = vmatpush1.bf16.msra.mxu0 %v139
  %552 = vmatprep.subr.bf16.mxu0 %v142
  %553 = vmatpush1.bf16.msra.mxu0 %v141
  %554 = vmatprep.subr.bf16.mxu0 %v144
  %555 = vmatpush1.bf16.msra.mxu0 %v143
  %556 = vmatprep.subr.bf16.mxu0 %v146
  %557 = vmatpush1.bf16.msra.mxu0 %v145
  %558 = vmatprep.subr.bf16.mxu0 %v148
  %559 = vmatpush1.bf16.msra.mxu0 %v147
  %560 = vmatprep.subr.bf16.mxu0 %v150
  %561 = vmatpush1.bf16.msra.mxu0 %v149
  %562 = vmatprep.subr.bf16.mxu0 %v152
  %563 = vmatpush1.bf16.msra.mxu0 %v151
  %564 = vmatprep.subr.bf16.mxu0 %v154
  %565 = vmatpush1.bf16.msra.mxu0 %v153
  %566 = vmatprep.subr.bf16.mxu0 %v188
  %567 = vmatpush1.bf16.msra.mxu0 %v185
  %568 = vmatprep.subr.bf16.mxu0 0
  %569 = vmatpush1.bf16.msra.mxu0 0
  %570 = vmatprep.subr.bf16.mxu0 0
  %571 = vmatpush1.bf16.msra.mxu0 0
  %572 = vmatprep.subr.bf16.mxu0 0
  %573 = vmatpush1.bf16.msra.mxu0 0
  %574 = vmatprep.subr.bf16.mxu0 0
  %575 = vmatpush1.bf16.msra.mxu0 0
  %576 = vmatprep.subr.bf16.mxu0 0
  %577 = vmatpush1.bf16.msra.mxu0 0
  %578 = vmatprep.subr.bf16.mxu0 0
  %579 = vmatpush1.bf16.msra.mxu0 0
  %580 = vmatprep.subr.bf16.mxu0 0
  %581 = vmatpush1.bf16.msra.mxu0 0
  %582 = vmatprep.mubr.bf16.mxu0 %v542
  %583 = vmatmul.mubr.bf16.gmra.mrb[0].mxu0 %v532
  %v584 = vpop.f32.mrb[0].mxu0
  %v585 = vadd.f32 0.0, %v584
  %v586 = vpop.f32.mrb[0].mxu0
  %v587 = vadd.f32 0.0, %v586
  %v588 = vpop.f32.mrb[0].mxu0
  %v589 = vadd.f32 0.0, %v588
  %v590 = vpop.f32.mrb[0].mxu0
  %v591 = vadd.f32 0.0, %v590
  %592 = vmatprep.mubr.bf16.mxu0 %v545
  %593 = vmatmul.mubr.bf16.gmra.mrb[0].mxu0 %v534
  %v594 = vpop.f32.mrb[0].mxu0
  %v595 = vadd.f32 0.0, %v594
  %v596 = vpop.f32.mrb[0].mxu0
  %v597 = vadd.f32 0.0, %v596
  %v598 = vpop.f32.mrb[0].mxu0
  %v599 = vadd.f32 0.0, %v598
  %v600 = vpop.f32.mrb[0].mxu0
  %v601 = vadd.f32 0.0, %v600
  %602 = vmatprep.mubr.bf16.mxu0 %v548
  %603 = vmatmul.mubr.bf16.gmra.mrb[0].mxu0 %v536
  %v604 = vpop.f32.mrb[0].mxu0
  %v605 = vadd.f32 0.0, %v604
  %v606 = vpop.f32.mrb[0].mxu0
  %v607 = vadd.f32 0.0, %v606
  %v608 = vpop.f32.mrb[0].mxu0
  %v609 = vadd.f32 0.0, %v608
  %v610 = vpop.f32.mrb[0].mxu0
  %v611 = vadd.f32 0.0, %v610
  %612 = vdwg.mxu0
  %v613 = vmax.f32 %v479, %v585
  %v614 = vmax.f32 %v481, %v587
  %v615 = vmax.f32 %v483, %v589
  %v616 = vmax.f32 %v485, %v591
  %v617 = vmax.f32 %v489, %v595
  %v618 = vmax.f32 %v491, %v597
  %v619 = vmax.f32 %v493, %v599
  %v620 = vmax.f32 %v495, %v601
  %v621 = vmax.f32 %v499, %v605
  %v622 = vmax.f32 %v501, %v607
  %v623 = vmax.f32 %v503, %v609
  %v624 = vmax.f32 %v505, %v611
  %v625 = vmax.f32 %v613, %v614
  %v626 = vmax.f32 %v615, %v616
  %v627 = vmax.f32 %v617, %v618
  %v628 = vmax.f32 %v619, %v620
  %v629 = vmax.f32 %v621, %v622
  %v630 = vmax.f32 %v623, %v624
  %v631 = vadd.f32 %v625, %v381
  %v632 = vadd.f32 %v626, %v381
  %v633 = vadd.f32 %v627, %v381
  %v634 = vadd.f32 %v628, %v381
  %v635 = vadd.f32 %v629, %v381
  %v636 = vadd.f32 %v630, %v381
  %v637 = vmax.f32 %v631, 0.0
  %v638 = vmax.f32 %v632, 0.0
  %v639 = vmax.f32 %v633, 0.0
  %v640 = vmax.f32 %v634, 0.0
  %v641 = vmax.f32 %v635, 0.0
  %v642 = vmax.f32 %v636, 0.0
  %v643 = vpack.c.bf16 %v638, %v637
  %v644 = vpack.c.bf16 %v640, %v639
  %v645 = vpack.c.bf16 %v642, %v641
  %646 = vst [vmem:[#allocation3] sm:$0xff] %v643
  %647 = vst [vmem:[#allocation3 + $0x8] sm:$0xff] %v644
  %648 = vst [vmem:[#allocation3 + $0x10] sm:$0xff] %v645
  %v649 = vld [vmem:[%s3] sm:$0xff]
  %v650 = vld [vmem:[%s3 + $0x8] sm:$0xff]
  %v651 = vld [vmem:[%s3 + $0x10] sm:$0xff]
  %v652 = vld [vmem:[%s3 + $0x18] sm:$0xff]
  %v653 = vld [vmem:[%s3 + $0x20] sm:$0xff]
  %v654 = vld [vmem:[%s3 + $0x28] sm:$0xff]
  %v655 = vld [vmem:[%s3 + $0x30] sm:$0xff]
  %v656 = vld [vmem:[%s3 + $0x38] sm:$0xff]
  %v657 = vld [vmem:[%s3 + $0x40] sm:$0xff]
  %v658 = vld [vmem:[%s3 + $0x48] sm:$0xff]
  %v659 = vld [vmem:[%s3 + $0x50] sm:$0xff]
  %v660 = vld [vmem:[%s3 + $0x58] sm:$0xff]
  %v661 = vld [vmem:[%s3 + $0x60] sm:$0xff]
  %v662 = vld [vmem:[%s3 + $0x68] sm:$0xff]
  %v663 = vld [vmem:[%s3 + $0x70] sm:$0xff]
  %v664 = vld [vmem:[%s3 + $0x78] sm:$0xff]
  %v665 = vld [vmem:[#allocation2] sm:$0xff]
  %v666 = vld [vmem:[#allocation2 + $0x8] sm:$0xff]
  %v667 = vld [vmem:[#allocation3] sm:$0xff]
  %v668 = vld [vmem:[#allocation3 + $0x8] sm:$0xff]
  %s669 = scalar_lea.vmem %s3, 128
  %v670 = vld [vmem:[%s669] sm:$0xff]
  %v671 = vld [vmem:[%s669 + $0x8] sm:$0xff]
  %v672 = vld [vmem:[%s669 + $0x10] sm:$0xff]
  %v673 = vld [vmem:[%s669 + $0x18] sm:$0xff]
  %v674 = vld [vmem:[%s669 + $0x20] sm:$0xff]
  %v675 = vld [vmem:[%s669 + $0x28] sm:$0xff]
  %v676 = vld [vmem:[%s669 + $0x30] sm:$0xff]
  %v677 = vld [vmem:[%s669 + $0x38] sm:$0xff]
  %v678 = vld [vmem:[%s669 + $0x40] sm:$0xff]
  %v679 = vld [vmem:[%s669 + $0x48] sm:$0xff]
  %v680 = vld [vmem:[%s669 + $0x50] sm:$0xff]
  %v681 = vld [vmem:[%s669 + $0x58] sm:$0xff]
  %v682 = vld [vmem:[%s669 + $0x60] sm:$0xff]
  %v683 = vld [vmem:[%s669 + $0x68] sm:$0xff]
  %v684 = vld [vmem:[%s669 + $0x70] sm:$0xff]
  %v685 = vld [vmem:[%s669 + $0x78] sm:$0xff]
  %v702 = vunpack.c.l.b16 %v670
  %v703 = vunpack.c.h.b16 %v670
  %v704 = vunpack.c.l.b16 %v671
  %v705 = vunpack.c.h.b16 %v671
  %v706 = vunpack.c.l.b16 %v672
  %v707 = vunpack.c.h.b16 %v672
  %v708 = vunpack.c.l.b16 %v673
  %v709 = vunpack.c.h.b16 %v673
  %v710 = vunpack.c.l.b16 %v674
  %v711 = vunpack.c.h.b16 %v674
  %v712 = vunpack.c.l.b16 %v675
  %v713 = vunpack.c.h.b16 %v675
  %v714 = vunpack.c.l.b16 %v676
  %v715 = vunpack.c.h.b16 %v676
  %v716 = vunpack.c.l.b16 %v677
  %v717 = vunpack.c.h.b16 %v677
  %v718 = vunpack.c.l.b16 %v678
  %v719 = vunpack.c.h.b16 %v678
  %v720 = vunpack.c.l.b16 %v679
  %v721 = vunpack.c.h.b16 %v679
  %v722 = vunpack.c.l.b16 %v680
  %v723 = vunpack.c.h.b16 %v680
  %v724 = vunpack.c.l.b16 %v681
  %v725 = vunpack.c.h.b16 %v681
  %v726 = vunpack.c.l.b16 %v682
  %v727 = vunpack.c.h.b16 %v682
  %v728 = vunpack.c.l.b16 %v683
  %v729 = vunpack.c.h.b16 %v683
  %v730 = vunpack.c.l.b16 %v684
  %v731 = vunpack.c.h.b16 %v684
  %v732 = vunpack.c.l.b16 %v685
  %v733 = vunpack.c.h.b16 %v685
  %v734 = vpack.c.b16 %v704, %v702
  %v735 = vpack.c.b16 %v705, %v703
  %v736 = vpack.c.b16 %v708, %v706
  %v737 = vpack.c.b16 %v709, %v707
  %v738 = vpack.c.b16 %v712, %v710
  %v739 = vpack.c.b16 %v713, %v711
  %v740 = vpack.c.b16 %v716, %v714
  %v741 = vpack.c.b16 %v717, %v715
  %v742 = vpack.c.b16 %v720, %v718
  %v743 = vpack.c.b16 %v721, %v719
  %v744 = vpack.c.b16 %v724, %v722
  %v745 = vpack.c.b16 %v725, %v723
  %v746 = vpack.c.b16 %v728, %v726
  %v747 = vpack.c.b16 %v729, %v727
  %v748 = vpack.c.b16 %v732, %v730
  %v749 = vpack.c.b16 %v733, %v731
  %766 = vmatprep.subr.bf16.mxu0 %v735
  %767 = vmatpush1.bf16.msra.mxu0 %v734
  %768 = vmatprep.subr.bf16.mxu0 %v737
  %769 = vmatpush1.bf16.msra.mxu0 %v736
  %770 = vmatprep.subr.bf16.mxu0 %v739
  %771 = vmatpush1.bf16.msra.mxu0 %v738
  %772 = vmatprep.subr.bf16.mxu0 %v741
  %773 = vmatpush1.bf16.msra.mxu0 %v740
  %774 = vmatprep.subr.bf16.mxu0 %v743
  %775 = vmatpush1.bf16.msra.mxu0 %v742
  %776 = vmatprep.subr.bf16.mxu0 %v745
  %777 = vmatpush1.bf16.msra.mxu0 %v744
  %778 = vmatprep.subr.bf16.mxu0 %v747
  %779 = vmatpush1.bf16.msra.mxu0 %v746
  %780 = vmatprep.subr.bf16.mxu0 %v749
  %781 = vmatpush1.bf16.msra.mxu0 %v748
  %782 = vmatprep.subr.bf16.mxu0 0
  %783 = vmatpush1.bf16.msra.mxu0 0
  %784 = vmatprep.subr.bf16.mxu0 0
  %785 = vmatpush1.bf16.msra.mxu0 0
  %786 = vmatprep.subr.bf16.mxu0 0
  %787 = vmatpush1.bf16.msra.mxu0 0
  %788 = vmatprep.subr.bf16.mxu0 0
  %789 = vmatpush1.bf16.msra.mxu0 0
  %790 = vmatprep.subr.bf16.mxu0 0
  %791 = vmatpush1.bf16.msra.mxu0 0
  %792 = vmatprep.subr.bf16.mxu0 0
  %793 = vmatpush1.bf16.msra.mxu0 0
  %794 = vmatprep.subr.bf16.mxu0 0
  %795 = vmatpush1.bf16.msra.mxu0 0
  %796 = vmatprep.subr.bf16.mxu0 0
  %797 = vmatpush1.bf16.msra.mxu0 0
  %798 = vmatprep.mubr.bf16.mxu0 0
  %799 = vmatmul.mubr.bf16.gmra.mrb[0].mxu0 %v667
  %v800 = vpop.f32.mrb[0].mxu0
  %v801 = vadd.f32 0.0, %v800
  %v802 = vpop.f32.mrb[0].mxu0
  %v803 = vadd.f32 0.0, %v802
  %v804 = vpop.f32.mrb[0].mxu0
  %v805 = vadd.f32 0.0, %v804
  %v806 = vpop.f32.mrb[0].mxu0
  %v807 = vadd.f32 0.0, %v806
  %808 = vmatprep.mubr.bf16.mxu0 0
  %809 = vmatmul.mubr.bf16.gmra.mrb[0].mxu0 %v668
  %v810 = vpop.f32.mrb[0].mxu0
  %v811 = vadd.f32 0.0, %v810
  %v812 = vpop.f32.mrb[0].mxu0
  %v813 = vadd.f32 0.0, %v812
  %v814 = vpop.f32.mrb[0].mxu0
  %v815 = vadd.f32 0.0, %v814
  %v816 = vpop.f32.mrb[0].mxu0
  %v817 = vadd.f32 0.0, %v816
  %818 = vdwg.mxu0
  %v835 = vunpack.c.l.b16 %v649
  %v836 = vunpack.c.h.b16 %v649
  %v837 = vunpack.c.l.b16 %v650
  %v838 = vunpack.c.h.b16 %v650
  %v839 = vunpack.c.l.b16 %v651
  %v840 = vunpack.c.h.b16 %v651
  %v841 = vunpack.c.l.b16 %v652
  %v842 = vunpack.c.h.b16 %v652
  %v843 = vunpack.c.l.b16 %v653
  %v844 = vunpack.c.h.b16 %v653
  %v845 = vunpack.c.l.b16 %v654
  %v846 = vunpack.c.h.b16 %v654
  %v847 = vunpack.c.l.b16 %v655
  %v848 = vunpack.c.h.b16 %v655
  %v849 = vunpack.c.l.b16 %v656
  %v850 = vunpack.c.h.b16 %v656
  %v851 = vunpack.c.l.b16 %v657
  %v852 = vunpack.c.h.b16 %v657
  %v853 = vunpack.c.l.b16 %v658
  %v854 = vunpack.c.h.b16 %v658
  %v855 = vunpack.c.l.b16 %v659
  %v856 = vunpack.c.h.b16 %v659
  %v857 = vunpack.c.l.b16 %v660
  %v858 = vunpack.c.h.b16 %v660
  %v859 = vunpack.c.l.b16 %v661
  %v860 = vunpack.c.h.b16 %v661
  %v861 = vunpack.c.l.b16 %v662
  %v862 = vunpack.c.h.b16 %v662
  %v863 = vunpack.c.l.b16 %v663
  %v864 = vunpack.c.h.b16 %v663
  %v865 = vunpack.c.l.b16 %v664
  %v866 = vunpack.c.h.b16 %v664
  %v867 = vpack.c.b16 %v837, %v835
  %v868 = vpack.c.b16 %v838, %v836
  %v869 = vpack.c.b16 %v841, %v839
  %v870 = vpack.c.b16 %v842, %v840
  %v871 = vpack.c.b16 %v845, %v843
  %v872 = vpack.c.b16 %v846, %v844
  %v873 = vpack.c.b16 %v849, %v847
  %v874 = vpack.c.b16 %v850, %v848
  %v875 = vpack.c.b16 %v853, %v851
  %v876 = vpack.c.b16 %v854, %v852
  %v877 = vpack.c.b16 %v857, %v855
  %v878 = vpack.c.b16 %v858, %v856
  %v879 = vpack.c.b16 %v861, %v859
  %v880 = vpack.c.b16 %v862, %v860
  %v881 = vpack.c.b16 %v865, %v863
  %v882 = vpack.c.b16 %v866, %v864
  %899 = vmatprep.subr.bf16.mxu0 %v868
  %900 = vmatpush1.bf16.msra.mxu0 %v867
  %901 = vmatprep.subr.bf16.mxu0 %v870
  %902 = vmatpush1.bf16.msra.mxu0 %v869
  %903 = vmatprep.subr.bf16.mxu0 %v872
  %904 = vmatpush1.bf16.msra.mxu0 %v871
  %905 = vmatprep.subr.bf16.mxu0 %v874
  %906 = vmatpush1.bf16.msra.mxu0 %v873
  %907 = vmatprep.subr.bf16.mxu0 %v876
  %908 = vmatpush1.bf16.msra.mxu0 %v875
  %909 = vmatprep.subr.bf16.mxu0 %v878
  %910 = vmatpush1.bf16.msra.mxu0 %v877
  %911 = vmatprep.subr.bf16.mxu0 %v880
  %912 = vmatpush1.bf16.msra.mxu0 %v879
  %913 = vmatprep.subr.bf16.mxu0 %v882
  %914 = vmatpush1.bf16.msra.mxu0 %v881
  %915 = vmatprep.subr.bf16.mxu0 0
  %916 = vmatpush1.bf16.msra.mxu0 0
  %917 = vmatprep.subr.bf16.mxu0 0
  %918 = vmatpush1.bf16.msra.mxu0 0
  %919 = vmatprep.subr.bf16.mxu0 0
  %920 = vmatpush1.bf16.msra.mxu0 0
  %921 = vmatprep.subr.bf16.mxu0 0
  %922 = vmatpush1.bf16.msra.mxu0 0
  %923 = vmatprep.subr.bf16.mxu0 0
  %924 = vmatpush1.bf16.msra.mxu0 0
  %925 = vmatprep.subr.bf16.mxu0 0
  %926 = vmatpush1.bf16.msra.mxu0 0
  %927 = vmatprep.subr.bf16.mxu0 0
  %928 = vmatpush1.bf16.msra.mxu0 0
  %929 = vmatprep.subr.bf16.mxu0 0
  %930 = vmatpush1.bf16.msra.mxu0 0
  %931 = vmatprep.mubr.bf16.mxu0 0
  %932 = vmatmul.mubr.bf16.gmra.mrb[0].mxu0 %v665
  %v933 = vpop.f32.mrb[0].mxu0
  %v934 = vadd.f32 %v801, %v933
  %v935 = vpop.f32.mrb[0].mxu0
  %v936 = vadd.f32 %v803, %v935
  %v937 = vpop.f32.mrb[0].mxu0
  %v938 = vadd.f32 %v805, %v937
  %v939 = vpop.f32.mrb[0].mxu0
  %v940 = vadd.f32 %v807, %v939
  %941 = vmatprep.mubr.bf16.mxu0 0
  %942 = vmatmul.mubr.bf16.gmra.mrb[0].mxu0 %v666
  %v943 = vpop.f32.mrb[0].mxu0
  %v944 = vadd.f32 %v811, %v943
  %v945 = vpop.f32.mrb[0].mxu0
  %v946 = vadd.f32 %v813, %v945
  %v947 = vpop.f32.mrb[0].mxu0
  %v948 = vadd.f32 %v815, %v947
  %v949 = vpop.f32.mrb[0].mxu0
  %v950 = vadd.f32 %v817, %v949
  %951 = vdwg.mxu0
  %v952 = vld [vmem:[#allocation2] sm:$0xf0]
  %v953 = vld [vmem:[#allocation2 + $0x8] sm:$0xff]
  %v954 = vld [vmem:[#allocation2 + $0x10] sm:$0xf]
  %vm958 = vcmask 1043456
  %v959 = vrot.slane %v952, 4
  %v960 = vrot.slane %v953, 4
  %v961 = vsel %vm958, %v959, %v960
  %v962 = vrot.slane %v954, 4
  %v963 = vsel %vm958, %v960, %v962
  %966 = vmatprep.subr.bf16.mxu0 %v735
  %967 = vmatpush1.bf16.msra.mxu0 %v734
  %968 = vmatprep.subr.bf16.mxu0 %v737
  %969 = vmatpush1.bf16.msra.mxu0 %v736
  %970 = vmatprep.subr.bf16.mxu0 %v739
  %971 = vmatpush1.bf16.msra.mxu0 %v738
  %972 = vmatprep.subr.bf16.mxu0 %v741
  %973 = vmatpush1.bf16.msra.mxu0 %v740
  %974 = vmatprep.subr.bf16.mxu0 %v743
  %975 = vmatpush1.bf16.msra.mxu0 %v742
  %976 = vmatprep.subr.bf16.mxu0 %v745
  %977 = vmatpush1.bf16.msra.mxu0 %v744
  %978 = vmatprep.subr.bf16.mxu0 %v747
  %979 = vmatpush1.bf16.msra.mxu0 %v746
  %980 = vmatprep.subr.bf16.mxu0 %v749
  %981 = vmatpush1.bf16.msra.mxu0 %v748
  %982 = vmatprep.subr.bf16.mxu0 0
  %983 = vmatpush1.bf16.msra.mxu0 0
  %984 = vmatprep.subr.bf16.mxu0 0
  %985 = vmatpush1.bf16.msra.mxu0 0
  %986 = vmatprep.subr.bf16.mxu0 0
  %987 = vmatpush1.bf16.msra.mxu0 0
  %988 = vmatprep.subr.bf16.mxu0 0
  %989 = vmatpush1.bf16.msra.mxu0 0
  %990 = vmatprep.subr.bf16.mxu0 0
  %991 = vmatpush1.bf16.msra.mxu0 0
  %992 = vmatprep.subr.bf16.mxu0 0
  %993 = vmatpush1.bf16.msra.mxu0 0
  %994 = vmatprep.subr.bf16.mxu0 0
  %995 = vmatpush1.bf16.msra.mxu0 0
  %996 = vmatprep.subr.bf16.mxu0 0
  %997 = vmatpush1.bf16.msra.mxu0 0
  %998 = vmatprep.mubr.bf16.mxu0 0
  %999 = vmatmul.mubr.bf16.gmra.mrb[0].mxu0 %v961
  %v1000 = vpop.f32.mrb[0].mxu0
  %v1001 = vadd.f32 0.0, %v1000
  %v1002 = vpop.f32.mrb[0].mxu0
  %v1003 = vadd.f32 0.0, %v1002
  %v1004 = vpop.f32.mrb[0].mxu0
  %v1005 = vadd.f32 0.0, %v1004
  %v1006 = vpop.f32.mrb[0].mxu0
  %v1007 = vadd.f32 0.0, %v1006
  %1008 = vmatprep.mubr.bf16.mxu0 0
  %1009 = vmatmul.mubr.bf16.gmra.mrb[0].mxu0 %v963
  %v1010 = vpop.f32.mrb[0].mxu0
  %v1011 = vadd.f32 0.0, %v1010
  %v1012 = vpop.f32.mrb[0].mxu0
  %v1013 = vadd.f32 0.0, %v1012
  %v1014 = vpop.f32.mrb[0].mxu0
  %v1015 = vadd.f32 0.0, %v1014
  %v1016 = vpop.f32.mrb[0].mxu0
  %v1017 = vadd.f32 0.0, %v1016
  %1018 = vdwg.mxu0
  %1019 = vmatprep.subr.bf16.mxu0 %v868
  %1020 = vmatpush1.bf16.msra.mxu0 %v867
  %1021 = vmatprep.subr.bf16.mxu0 %v870
  %1022 = vmatpush1.bf16.msra.mxu0 %v869
  %1023 = vmatprep.subr.bf16.mxu0 %v872
  %1024 = vmatpush1.bf16.msra.mxu0 %v871
  %1025 = vmatprep.subr.bf16.mxu0 %v874
  %1026 = vmatpush1.bf16.msra.mxu0 %v873
  %1027 = vmatprep.subr.bf16.mxu0 %v876
  %1028 = vmatpush1.bf16.msra.mxu0 %v875
  %1029 = vmatprep.subr.bf16.mxu0 %v878
  %1030 = vmatpush1.bf16.msra.mxu0 %v877
  %1031 = vmatprep.subr.bf16.mxu0 %v880
  %1032 = vmatpush1.bf16.msra.mxu0 %v879
  %1033 = vmatprep.subr.bf16.mxu0 %v882
  %1034 = vmatpush1.bf16.msra.mxu0 %v881
  %1035 = vmatprep.subr.bf16.mxu0 0
  %1036 = vmatpush1.bf16.msra.mxu0 0
  %1037 = vmatprep.subr.bf16.mxu0 0
  %1038 = vmatpush1.bf16.msra.mxu0 0
  %1039 = vmatprep.subr.bf16.mxu0 0
  %1040 = vmatpush1.bf16.msra.mxu0 0
  %1041 = vmatprep.subr.bf16.mxu0 0
  %1042 = vmatpush1.bf16.msra.mxu0 0
  %1043 = vmatprep.subr.bf16.mxu0 0
  %1044 = vmatpush1.bf16.msra.mxu0 0
  %1045 = vmatprep.subr.bf16.mxu0 0
  %1046 = vmatpush1.bf16.msra.mxu0 0
  %1047 = vmatprep.subr.bf16.mxu0 0
  %1048 = vmatpush1.bf16.msra.mxu0 0
  %1049 = vmatprep.subr.bf16.mxu0 0
  %1050 = vmatpush1.bf16.msra.mxu0 0
  %1051 = vmatprep.mubr.bf16.mxu0 0
  %1052 = vmatmul.mubr.bf16.gmra.mrb[0].mxu0 %v667
  %v1053 = vpop.f32.mrb[0].mxu0
  %v1054 = vadd.f32 %v1001, %v1053
  %v1055 = vpop.f32.mrb[0].mxu0
  %v1056 = vadd.f32 %v1003, %v1055
  %v1057 = vpop.f32.mrb[0].mxu0
  %v1058 = vadd.f32 %v1005, %v1057
  %v1059 = vpop.f32.mrb[0].mxu0
  %v1060 = vadd.f32 %v1007, %v1059
  %1061 = vmatprep.mubr.bf16.mxu0 0
  %1062 = vmatmul.mubr.bf16.gmra.mrb[0].mxu0 %v668
  %v1063 = vpop.f32.mrb[0].mxu0
  %v1064 = vadd.f32 %v1011, %v1063
  %v1065 = vpop.f32.mrb[0].mxu0
  %v1066 = vadd.f32 %v1013, %v1065
  %v1067 = vpop.f32.mrb[0].mxu0
  %v1068 = vadd.f32 %v1015, %v1067
  %v1069 = vpop.f32.mrb[0].mxu0
  %v1070 = vadd.f32 %v1017, %v1069
  %1071 = vdwg.mxu0
  %s1072 = scalar_lea.vmem %s3, 256
  %v1073 = vld [vmem:[%s1072] sm:$0xff]
  %v1074 = vld [vmem:[%s1072 + $0x8] sm:$0xff]
  %v1075 = vld [vmem:[%s1072 + $0x10] sm:$0xff]
  %v1076 = vld [vmem:[%s1072 + $0x18] sm:$0xff]
  %v1077 = vld [vmem:[%s1072 + $0x20] sm:$0xff]
  %v1078 = vld [vmem:[%s1072 + $0x28] sm:$0xff]
  %v1079 = vld [vmem:[%s1072 + $0x30] sm:$0xff]
  %v1080 = vld [vmem:[%s1072 + $0x38] sm:$0xff]
  %v1081 = vld [vmem:[%s1072 + $0x40] sm:$0xff]
  %v1082 = vld [vmem:[%s1072 + $0x48] sm:$0xff]
  %v1083 = vld [vmem:[%s1072 + $0x50] sm:$0xff]
  %v1084 = vld [vmem:[%s1072 + $0x58] sm:$0xff]
  %v1085 = vld [vmem:[%s1072 + $0x60] sm:$0xff]
  %v1086 = vld [vmem:[%s1072 + $0x68] sm:$0xff]
  %v1087 = vld [vmem:[%s1072 + $0x70] sm:$0xff]
  %v1088 = vld [vmem:[%s1072 + $0x78] sm:$0xff]
  %v1105 = vunpack.c.l.b16 %v1073
  %v1106 = vunpack.c.h.b16 %v1073
  %v1107 = vunpack.c.l.b16 %v1074
  %v1108 = vunpack.c.h.b16 %v1074
  %v1109 = vunpack.c.l.b16 %v1075
  %v1110 = vunpack.c.h.b16 %v1075
  %v1111 = vunpack.c.l.b16 %v1076
  %v1112 = vunpack.c.h.b16 %v1076
  %v1113 = vunpack.c.l.b16 %v1077
  %v1114 = vunpack.c.h.b16 %v1077
  %v1115 = vunpack.c.l.b16 %v1078
  %v1116 = vunpack.c.h.b16 %v1078
  %v1117 = vunpack.c.l.b16 %v1079
  %v1118 = vunpack.c.h.b16 %v1079
  %v1119 = vunpack.c.l.b16 %v1080
  %v1120 = vunpack.c.h.b16 %v1080
  %v1121 = vunpack.c.l.b16 %v1081
  %v1122 = vunpack.c.h.b16 %v1081
  %v1123 = vunpack.c.l.b16 %v1082
  %v1124 = vunpack.c.h.b16 %v1082
  %v1125 = vunpack.c.l.b16 %v1083
  %v1126 = vunpack.c.h.b16 %v1083
  %v1127 = vunpack.c.l.b16 %v1084
  %v1128 = vunpack.c.h.b16 %v1084
  %v1129 = vunpack.c.l.b16 %v1085
  %v1130 = vunpack.c.h.b16 %v1085
  %v1131 = vunpack.c.l.b16 %v1086
  %v1132 = vunpack.c.h.b16 %v1086
  %v1133 = vunpack.c.l.b16 %v1087
  %v1134 = vunpack.c.h.b16 %v1087
  %v1135 = vunpack.c.l.b16 %v1088
  %v1136 = vunpack.c.h.b16 %v1088
  %v1137 = vpack.c.b16 %v1107, %v1105
  %v1138 = vpack.c.b16 %v1108, %v1106
  %v1139 = vpack.c.b16 %v1111, %v1109
  %v1140 = vpack.c.b16 %v1112, %v1110
  %v1141 = vpack.c.b16 %v1115, %v1113
  %v1142 = vpack.c.b16 %v1116, %v1114
  %v1143 = vpack.c.b16 %v1119, %v1117
  %v1144 = vpack.c.b16 %v1120, %v1118
  %v1145 = vpack.c.b16 %v1123, %v1121
  %v1146 = vpack.c.b16 %v1124, %v1122
  %v1147 = vpack.c.b16 %v1127, %v1125
  %v1148 = vpack.c.b16 %v1128, %v1126
  %v1149 = vpack.c.b16 %v1131, %v1129
  %v1150 = vpack.c.b16 %v1132, %v1130
  %v1151 = vpack.c.b16 %v1135, %v1133
  %v1152 = vpack.c.b16 %v1136, %v1134
  %1169 = vmatprep.subr.bf16.mxu0 %v1138
  %1170 = vmatpush1.bf16.msra.mxu0 %v1137
  %1171 = vmatprep.subr.bf16.mxu0 %v1140
  %1172 = vmatpush1.bf16.msra.mxu0 %v1139
  %1173 = vmatprep.subr.bf16.mxu0 %v1142
  %1174 = vmatpush1.bf16.msra.mxu0 %v1141
  %1175 = vmatprep.subr.bf16.mxu0 %v1144
  %1176 = vmatpush1.bf16.msra.mxu0 %v1143
  %1177 = vmatprep.subr.bf16.mxu0 %v1146
  %1178 = vmatpush1.bf16.msra.mxu0 %v1145
  %1179 = vmatprep.subr.bf16.mxu0 %v1148
  %1180 = vmatpush1.bf16.msra.mxu0 %v1147
  %1181 = vmatprep.subr.bf16.mxu0 %v1150
  %1182 = vmatpush1.bf16.msra.mxu0 %v1149
  %1183 = vmatprep.subr.bf16.mxu0 %v1152
  %1184 = vmatpush1.bf16.msra.mxu0 %v1151
  %1185 = vmatprep.subr.bf16.mxu0 0
  %1186 = vmatpush1.bf16.msra.mxu0 0
  %1187 = vmatprep.subr.bf16.mxu0 0
  %1188 = vmatpush1.bf16.msra.mxu0 0
  %1189 = vmatprep.subr.bf16.mxu0 0
  %1190 = vmatpush1.bf16.msra.mxu0 0
  %1191 = vmatprep.subr.bf16.mxu0 0
  %1192 = vmatpush1.bf16.msra.mxu0 0
  %1193 = vmatprep.subr.bf16.mxu0 0
  %1194 = vmatpush1.bf16.msra.mxu0 0
  %1195 = vmatprep.subr.bf16.mxu0 0
  %1196 = vmatpush1.bf16.msra.mxu0 0
  %1197 = vmatprep.subr.bf16.mxu0 0
  %1198 = vmatpush1.bf16.msra.mxu0 0
  %1199 = vmatprep.subr.bf16.mxu0 0
  %1200 = vmatpush1.bf16.msra.mxu0 0
  %1201 = vmatprep.mubr.bf16.mxu0 0
  %1202 = vmatmul.mubr.bf16.gmra.mrb[0].mxu0 %v961
  %v1203 = vpop.f32.mrb[0].mxu0
  %v1204 = vadd.f32 0.0, %v1203
  %v1205 = vpop.f32.mrb[0].mxu0
  %v1206 = vadd.f32 0.0, %v1205
  %v1207 = vpop.f32.mrb[0].mxu0
  %v1208 = vadd.f32 0.0, %v1207
  %v1209 = vpop.f32.mrb[0].mxu0
  %v1210 = vadd.f32 0.0, %v1209
  %1211 = vmatprep.mubr.bf16.mxu0 0
  %1212 = vmatmul.mubr.bf16.gmra.mrb[0].mxu0 %v963
  %v1213 = vpop.f32.mrb[0].mxu0
  %v1214 = vadd.f32 0.0, %v1213
  %v1215 = vpop.f32.mrb[0].mxu0
  %v1216 = vadd.f32 0.0, %v1215
  %v1217 = vpop.f32.mrb[0].mxu0
  %v1218 = vadd.f32 0.0, %v1217
  %v1219 = vpop.f32.mrb[0].mxu0
  %v1220 = vadd.f32 0.0, %v1219
  %1221 = vdwg.mxu0
  %v1222 = vadd.f32 %v934, %v1204
  %v1223 = vadd.f32 %v936, %v1206
  %v1224 = vadd.f32 %v938, %v1208
  %v1225 = vadd.f32 %v940, %v1210
  %v1226 = vadd.f32 %v944, %v1214
  %v1227 = vadd.f32 %v946, %v1216
  %v1228 = vadd.f32 %v948, %v1218
  %v1229 = vadd.f32 %v950, %v1220
  %v1230 = vld [vmem:[#allocation3] sm:$0xf0]
  %v1231 = vld [vmem:[#allocation3 + $0x8] sm:$0xff]
  %v1232 = vld [vmem:[#allocation3 + $0x10] sm:$0xf]
  %v1236 = vrot.slane %v1230, 4
  %v1237 = vrot.slane %v1231, 4
  %v1238 = vsel %vm958, %v1236, %v1237
  %v1239 = vrot.slane %v1232, 4
  %v1240 = vsel %vm958, %v1237, %v1239
  %1243 = vmatprep.subr.bf16.mxu0 %v1138
  %1244 = vmatpush1.bf16.msra.mxu0 %v1137
  %1245 = vmatprep.subr.bf16.mxu0 %v1140
  %1246 = vmatpush1.bf16.msra.mxu0 %v1139
  %1247 = vmatprep.subr.bf16.mxu0 %v1142
  %1248 = vmatpush1.bf16.msra.mxu0 %v1141
  %1249 = vmatprep.subr.bf16.mxu0 %v1144
  %1250 = vmatpush1.bf16.msra.mxu0 %v1143
  %1251 = vmatprep.subr.bf16.mxu0 %v1146
  %1252 = vmatpush1.bf16.msra.mxu0 %v1145
  %1253 = vmatprep.subr.bf16.mxu0 %v1148
  %1254 = vmatpush1.bf16.msra.mxu0 %v1147
  %1255 = vmatprep.subr.bf16.mxu0 %v1150
  %1256 = vmatpush1.bf16.msra.mxu0 %v1149
  %1257 = vmatprep.subr.bf16.mxu0 %v1152
  %1258 = vmatpush1.bf16.msra.mxu0 %v1151
  %1259 = vmatprep.subr.bf16.mxu0 0
  %1260 = vmatpush1.bf16.msra.mxu0 0
  %1261 = vmatprep.subr.bf16.mxu0 0
  %1262 = vmatpush1.bf16.msra.mxu0 0
  %1263 = vmatprep.subr.bf16.mxu0 0
  %1264 = vmatpush1.bf16.msra.mxu0 0
  %1265 = vmatprep.subr.bf16.mxu0 0
  %1266 = vmatpush1.bf16.msra.mxu0 0
  %1267 = vmatprep.subr.bf16.mxu0 0
  %1268 = vmatpush1.bf16.msra.mxu0 0
  %1269 = vmatprep.subr.bf16.mxu0 0
  %1270 = vmatpush1.bf16.msra.mxu0 0
  %1271 = vmatprep.subr.bf16.mxu0 0
  %1272 = vmatpush1.bf16.msra.mxu0 0
  %1273 = vmatprep.subr.bf16.mxu0 0
  %1274 = vmatpush1.bf16.msra.mxu0 0
  %1275 = vmatprep.mubr.bf16.mxu0 0
  %1276 = vmatmul.mubr.bf16.gmra.mrb[0].mxu0 %v1238
  %v1277 = vpop.f32.mrb[0].mxu0
  %v1278 = vadd.f32 0.0, %v1277
  %v1279 = vpop.f32.mrb[0].mxu0
  %v1280 = vadd.f32 0.0, %v1279
  %v1281 = vpop.f32.mrb[0].mxu0
  %v1282 = vadd.f32 0.0, %v1281
  %v1283 = vpop.f32.mrb[0].mxu0
  %v1284 = vadd.f32 0.0, %v1283
  %1285 = vmatprep.mubr.bf16.mxu0 0
  %1286 = vmatmul.mubr.bf16.gmra.mrb[0].mxu0 %v1240
  %v1287 = vpop.f32.mrb[0].mxu0
  %v1288 = vadd.f32 0.0, %v1287
  %v1289 = vpop.f32.mrb[0].mxu0
  %v1290 = vadd.f32 0.0, %v1289
  %v1291 = vpop.f32.mrb[0].mxu0
  %v1292 = vadd.f32 0.0, %v1291
  %v1293 = vpop.f32.mrb[0].mxu0
  %v1294 = vadd.f32 0.0, %v1293
  %1295 = vdwg.mxu0
  %v1296 = vadd.f32 %v1054, %v1278
  %v1297 = vadd.f32 %v1056, %v1280
  %v1298 = vadd.f32 %v1058, %v1282
  %v1299 = vadd.f32 %v1060, %v1284
  %v1300 = vadd.f32 %v1064, %v1288
  %v1301 = vadd.f32 %v1066, %v1290
  %v1302 = vadd.f32 %v1068, %v1292
  %v1303 = vadd.f32 %v1070, %v1294
  %s1304 = scalar_lea.vmem %s3, 384
  %v1305 = vld [vmem:[%s1304] sm:$0xff]
  %v1306 = vld [vmem:[%s1304 + $0x8] sm:$0xff]
  %v1307 = vld [vmem:[%s1304 + $0x10] sm:$0xff]
  %v1308 = vld [vmem:[%s1304 + $0x18] sm:$0xff]
  %v1309 = vld [vmem:[%s1304 + $0x20] sm:$0xff]
  %v1310 = vld [vmem:[%s1304 + $0x28] sm:$0xff]
  %v1311 = vld [vmem:[%s1304 + $0x30] sm:$0xff]
  %v1312 = vld [vmem:[%s1304 + $0x38] sm:$0xff]
  %v1313 = vld [vmem:[%s1304 + $0x40] sm:$0xff]
  %v1314 = vld [vmem:[%s1304 + $0x48] sm:$0xff]
  %v1315 = vld [vmem:[%s1304 + $0x50] sm:$0xff]
  %v1316 = vld [vmem:[%s1304 + $0x58] sm:$0xff]
  %v1317 = vld [vmem:[%s1304 + $0x60] sm:$0xff]
  %v1318 = vld [vmem:[%s1304 + $0x68] sm:$0xff]
  %v1319 = vld [vmem:[%s1304 + $0x70] sm:$0xff]
  %v1320 = vld [vmem:[%s1304 + $0x78] sm:$0xff]
  %v1337 = vunpack.c.l.b16 %v1305
  %v1338 = vunpack.c.h.b16 %v1305
  %v1339 = vunpack.c.l.b16 %v1306
  %v1340 = vunpack.c.h.b16 %v1306
  %v1341 = vunpack.c.l.b16 %v1307
  %v1342 = vunpack.c.h.b16 %v1307
  %v1343 = vunpack.c.l.b16 %v1308
  %v1344 = vunpack.c.h.b16 %v1308
  %v1345 = vunpack.c.l.b16 %v1309
  %v1346 = vunpack.c.h.b16 %v1309
  %v1347 = vunpack.c.l.b16 %v1310
  %v1348 = vunpack.c.h.b16 %v1310
  %v1349 = vunpack.c.l.b16 %v1311
  %v1350 = vunpack.c.h.b16 %v1311
  %v1351 = vunpack.c.l.b16 %v1312
  %v1352 = vunpack.c.h.b16 %v1312
  %v1353 = vunpack.c.l.b16 %v1313
  %v1354 = vunpack.c.h.b16 %v1313
  %v1355 = vunpack.c.l.b16 %v1314
  %v1356 = vunpack.c.h.b16 %v1314
  %v1357 = vunpack.c.l.b16 %v1315
  %v1358 = vunpack.c.h.b16 %v1315
  %v1359 = vunpack.c.l.b16 %v1316
  %v1360 = vunpack.c.h.b16 %v1316
  %v1361 = vunpack.c.l.b16 %v1317
  %v1362 = vunpack.c.h.b16 %v1317
  %v1363 = vunpack.c.l.b16 %v1318
  %v1364 = vunpack.c.h.b16 %v1318
  %v1365 = vunpack.c.l.b16 %v1319
  %v1366 = vunpack.c.h.b16 %v1319
  %v1367 = vunpack.c.l.b16 %v1320
  %v1368 = vunpack.c.h.b16 %v1320
  %v1369 = vpack.c.b16 %v1339, %v1337
  %v1370 = vpack.c.b16 %v1340, %v1338
  %v1371 = vpack.c.b16 %v1343, %v1341
  %v1372 = vpack.c.b16 %v1344, %v1342
  %v1373 = vpack.c.b16 %v1347, %v1345
  %v1374 = vpack.c.b16 %v1348, %v1346
  %v1375 = vpack.c.b16 %v1351, %v1349
  %v1376 = vpack.c.b16 %v1352, %v1350
  %v1377 = vpack.c.b16 %v1355, %v1353
  %v1378 = vpack.c.b16 %v1356, %v1354
  %v1379 = vpack.c.b16 %v1359, %v1357
  %v1380 = vpack.c.b16 %v1360, %v1358
  %v1381 = vpack.c.b16 %v1363, %v1361
  %v1382 = vpack.c.b16 %v1364, %v1362
  %v1383 = vpack.c.b16 %v1367, %v1365
  %v1384 = vpack.c.b16 %v1368, %v1366
  %1401 = vmatprep.subr.bf16.mxu0 %v1370
  %1402 = vmatpush1.bf16.msra.mxu0 %v1369
  %1403 = vmatprep.subr.bf16.mxu0 %v1372
  %1404 = vmatpush1.bf16.msra.mxu0 %v1371
  %1405 = vmatprep.subr.bf16.mxu0 %v1374
  %1406 = vmatpush1.bf16.msra.mxu0 %v1373
  %1407 = vmatprep.subr.bf16.mxu0 %v1376
  %1408 = vmatpush1.bf16.msra.mxu0 %v1375
  %1409 = vmatprep.subr.bf16.mxu0 %v1378
  %1410 = vmatpush1.bf16.msra.mxu0 %v1377
  %1411 = vmatprep.subr.bf16.mxu0 %v1380
  %1412 = vmatpush1.bf16.msra.mxu0 %v1379
  %1413 = vmatprep.subr.bf16.mxu0 %v1382
  %1414 = vmatpush1.bf16.msra.mxu0 %v1381
  %1415 = vmatprep.subr.bf16.mxu0 %v1384
  %1416 = vmatpush1.bf16.msra.mxu0 %v1383
  %1417 = vmatprep.subr.bf16.mxu0 0
  %1418 = vmatpush1.bf16.msra.mxu0 0
  %1419 = vmatprep.subr.bf16.mxu0 0
  %1420 = vmatpush1.bf16.msra.mxu0 0
  %1421 = vmatprep.subr.bf16.mxu0 0
  %1422 = vmatpush1.bf16.msra.mxu0 0
  %1423 = vmatprep.subr.bf16.mxu0 0
  %1424 = vmatpush1.bf16.msra.mxu0 0
  %1425 = vmatprep.subr.bf16.mxu0 0
  %1426 = vmatpush1.bf16.msra.mxu0 0
  %1427 = vmatprep.subr.bf16.mxu0 0
  %1428 = vmatpush1.bf16.msra.mxu0 0
  %1429 = vmatprep.subr.bf16.mxu0 0
  %1430 = vmatpush1.bf16.msra.mxu0 0
  %1431 = vmatprep.subr.bf16.mxu0 0
  %1432 = vmatpush1.bf16.msra.mxu0 0
  %1433 = vmatprep.mubr.bf16.mxu0 0
  %1434 = vmatmul.mubr.bf16.gmra.mrb[0].mxu0 %v1238
  %v1435 = vpop.f32.mrb[0].mxu0
  %v1436 = vadd.f32 0.0, %v1435
  %v1437 = vpop.f32.mrb[0].mxu0
  %v1438 = vadd.f32 0.0, %v1437
  %v1439 = vpop.f32.mrb[0].mxu0
  %v1440 = vadd.f32 0.0, %v1439
  %v1441 = vpop.f32.mrb[0].mxu0
  %v1442 = vadd.f32 0.0, %v1441
  %1443 = vmatprep.mubr.bf16.mxu0 0
  %1444 = vmatmul.mubr.bf16.gmra.mrb[0].mxu0 %v1240
  %v1445 = vpop.f32.mrb[0].mxu0
  %v1446 = vadd.f32 0.0, %v1445
  %v1447 = vpop.f32.mrb[0].mxu0
  %v1448 = vadd.f32 0.0, %v1447
  %v1449 = vpop.f32.mrb[0].mxu0
  %v1450 = vadd.f32 0.0, %v1449
  %v1451 = vpop.f32.mrb[0].mxu0
  %v1452 = vadd.f32 0.0, %v1451
  %1453 = vdwg.mxu0
  %v1454 = vadd.f32 %v1222, %v1436
  %v1455 = vadd.f32 %v1223, %v1438
  %v1456 = vadd.f32 %v1224, %v1440
  %v1457 = vadd.f32 %v1225, %v1442
  %v1458 = vadd.f32 %v1226, %v1446
  %v1459 = vadd.f32 %v1227, %v1448
  %v1460 = vadd.f32 %v1228, %v1450
  %v1461 = vadd.f32 %v1229, %v1452
  %v1462 = vld [vmem:[#allocation2 + $0x10] sm:$0xff]
  %1463 = vmatprep.subr.bf16.mxu0 %v1370
  %1464 = vmatpush1.bf16.msra.mxu0 %v1369
  %1465 = vmatprep.subr.bf16.mxu0 %v1372
  %1466 = vmatpush1.bf16.msra.mxu0 %v1371
  %1467 = vmatprep.subr.bf16.mxu0 %v1374
  %1468 = vmatpush1.bf16.msra.mxu0 %v1373
  %1469 = vmatprep.subr.bf16.mxu0 %v1376
  %1470 = vmatpush1.bf16.msra.mxu0 %v1375
  %1471 = vmatprep.subr.bf16.mxu0 %v1378
  %1472 = vmatpush1.bf16.msra.mxu0 %v1377
  %1473 = vmatprep.subr.bf16.mxu0 %v1380
  %1474 = vmatpush1.bf16.msra.mxu0 %v1379
  %1475 = vmatprep.subr.bf16.mxu0 %v1382
  %1476 = vmatpush1.bf16.msra.mxu0 %v1381
  %1477 = vmatprep.subr.bf16.mxu0 %v1384
  %1478 = vmatpush1.bf16.msra.mxu0 %v1383
  %1479 = vmatprep.subr.bf16.mxu0 0
  %1480 = vmatpush1.bf16.msra.mxu0 0
  %1481 = vmatprep.subr.bf16.mxu0 0
  %1482 = vmatpush1.bf16.msra.mxu0 0
  %1483 = vmatprep.subr.bf16.mxu0 0
  %1484 = vmatpush1.bf16.msra.mxu0 0
  %1485 = vmatprep.subr.bf16.mxu0 0
  %1486 = vmatpush1.bf16.msra.mxu0 0
  %1487 = vmatprep.subr.bf16.mxu0 0
  %1488 = vmatpush1.bf16.msra.mxu0 0
  %1489 = vmatprep.subr.bf16.mxu0 0
  %1490 = vmatpush1.bf16.msra.mxu0 0
  %1491 = vmatprep.subr.bf16.mxu0 0
  %1492 = vmatpush1.bf16.msra.mxu0 0
  %1493 = vmatprep.subr.bf16.mxu0 0
  %1494 = vmatpush1.bf16.msra.mxu0 0
  %1495 = vmatprep.mubr.bf16.mxu0 0
  %1496 = vmatmul.mubr.bf16.gmra.mrb[0].mxu0 %v953
  %v1497 = vpop.f32.mrb[0].mxu0
  %v1498 = vadd.f32 0.0, %v1497
  %v1499 = vpop.f32.mrb[0].mxu0
  %v1500 = vadd.f32 0.0, %v1499
  %v1501 = vpop.f32.mrb[0].mxu0
  %v1502 = vadd.f32 0.0, %v1501
  %v1503 = vpop.f32.mrb[0].mxu0
  %v1504 = vadd.f32 0.0, %v1503
  %1505 = vmatprep.mubr.bf16.mxu0 0
  %1506 = vmatmul.mubr.bf16.gmra.mrb[0].mxu0 %v1462
  %v1507 = vpop.f32.mrb[0].mxu0
  %v1508 = vadd.f32 0.0, %v1507
  %v1509 = vpop.f32.mrb[0].mxu0
  %v1510 = vadd.f32 0.0, %v1509
  %v1511 = vpop.f32.mrb[0].mxu0
  %v1512 = vadd.f32 0.0, %v1511
  %v1513 = vpop.f32.mrb[0].mxu0
  %v1514 = vadd.f32 0.0, %v1513
  %1515 = vdwg.mxu0
  %v1516 = vadd.f32 %v1296, %v1498
  %v1517 = vadd.f32 %v1297, %v1500
  %v1518 = vadd.f32 %v1298, %v1502
  %v1519 = vadd.f32 %v1299, %v1504
  %v1520 = vadd.f32 %v1300, %v1508
  %v1521 = vadd.f32 %v1301, %v1510
  %v1522 = vadd.f32 %v1302, %v1512
  %v1523 = vadd.f32 %v1303, %v1514
  %s1524 = scalar_lea.vmem %s3, 512
  %v1525 = vld [vmem:[%s1524] sm:$0xff]
  %v1526 = vld [vmem:[%s1524 + $0x8] sm:$0xff]
  %v1527 = vld [vmem:[%s1524 + $0x10] sm:$0xff]
  %v1528 = vld [vmem:[%s1524 + $0x18] sm:$0xff]
  %v1529 = vld [vmem:[%s1524 + $0x20] sm:$0xff]
  %v1530 = vld [vmem:[%s1524 + $0x28] sm:$0xff]
  %v1531 = vld [vmem:[%s1524 + $0x30] sm:$0xff]
  %v1532 = vld [vmem:[%s1524 + $0x38] sm:$0xff]
  %v1533 = vld [vmem:[%s1524 + $0x40] sm:$0xff]
  %v1534 = vld [vmem:[%s1524 + $0x48] sm:$0xff]
  %v1535 = vld [vmem:[%s1524 + $0x50] sm:$0xff]
  %v1536 = vld [vmem:[%s1524 + $0x58] sm:$0xff]
  %v1537 = vld [vmem:[%s1524 + $0x60] sm:$0xff]
  %v1538 = vld [vmem:[%s1524 + $0x68] sm:$0xff]
  %v1539 = vld [vmem:[%s1524 + $0x70] sm:$0xff]
  %v1540 = vld [vmem:[%s1524 + $0x78] sm:$0xff]
  %v1557 = vunpack.c.l.b16 %v1525
  %v1558 = vunpack.c.h.b16 %v1525
  %v1559 = vunpack.c.l.b16 %v1526
  %v1560 = vunpack.c.h.b16 %v1526
  %v1561 = vunpack.c.l.b16 %v1527
  %v1562 = vunpack.c.h.b16 %v1527
  %v1563 = vunpack.c.l.b16 %v1528
  %v1564 = vunpack.c.h.b16 %v1528
  %v1565 = vunpack.c.l.b16 %v1529
  %v1566 = vunpack.c.h.b16 %v1529
  %v1567 = vunpack.c.l.b16 %v1530
  %v1568 = vunpack.c.h.b16 %v1530
  %v1569 = vunpack.c.l.b16 %v1531
  %v1570 = vunpack.c.h.b16 %v1531
  %v1571 = vunpack.c.l.b16 %v1532
  %v1572 = vunpack.c.h.b16 %v1532
  %v1573 = vunpack.c.l.b16 %v1533
  %v1574 = vunpack.c.h.b16 %v1533
  %v1575 = vunpack.c.l.b16 %v1534
  %v1576 = vunpack.c.h.b16 %v1534
  %v1577 = vunpack.c.l.b16 %v1535
  %v1578 = vunpack.c.h.b16 %v1535
  %v1579 = vunpack.c.l.b16 %v1536
  %v1580 = vunpack.c.h.b16 %v1536
  %v1581 = vunpack.c.l.b16 %v1537
  %v1582 = vunpack.c.h.b16 %v1537
  %v1583 = vunpack.c.l.b16 %v1538
  %v1584 = vunpack.c.h.b16 %v1538
  %v1585 = vunpack.c.l.b16 %v1539
  %v1586 = vunpack.c.h.b16 %v1539
  %v1587 = vunpack.c.l.b16 %v1540
  %v1588 = vunpack.c.h.b16 %v1540
  %v1589 = vpack.c.b16 %v1559, %v1557
  %v1590 = vpack.c.b16 %v1560, %v1558
  %v1591 = vpack.c.b16 %v1563, %v1561
  %v1592 = vpack.c.b16 %v1564, %v1562
  %v1593 = vpack.c.b16 %v1567, %v1565
  %v1594 = vpack.c.b16 %v1568, %v1566
  %v1595 = vpack.c.b16 %v1571, %v1569
  %v1596 = vpack.c.b16 %v1572, %v1570
  %v1597 = vpack.c.b16 %v1575, %v1573
  %v1598 = vpack.c.b16 %v1576, %v1574
  %v1599 = vpack.c.b16 %v1579, %v1577
  %v1600 = vpack.c.b16 %v1580, %v1578
  %v1601 = vpack.c.b16 %v1583, %v1581
  %v1602 = vpack.c.b16 %v1584, %v1582
  %v1603 = vpack.c.b16 %v1587, %v1585
  %v1604 = vpack.c.b16 %v1588, %v1586
  %1621 = vmatprep.subr.bf16.mxu0 %v1590
  %1622 = vmatpush1.bf16.msra.mxu0 %v1589
  %1623 = vmatprep.subr.bf16.mxu0 %v1592
  %1624 = vmatpush1.bf16.msra.mxu0 %v1591
  %1625 = vmatprep.subr.bf16.mxu0 %v1594
  %1626 = vmatpush1.bf16.msra.mxu0 %v1593
  %1627 = vmatprep.subr.bf16.mxu0 %v1596
  %1628 = vmatpush1.bf16.msra.mxu0 %v1595
  %1629 = vmatprep.subr.bf16.mxu0 %v1598
  %1630 = vmatpush1.bf16.msra.mxu0 %v1597
  %1631 = vmatprep.subr.bf16.mxu0 %v1600
  %1632 = vmatpush1.bf16.msra.mxu0 %v1599
  %1633 = vmatprep.subr.bf16.mxu0 %v1602
  %1634 = vmatpush1.bf16.msra.mxu0 %v1601
  %1635 = vmatprep.subr.bf16.mxu0 %v1604
  %1636 = vmatpush1.bf16.msra.mxu0 %v1603
  %1637 = vmatprep.subr.bf16.mxu0 0
  %1638 = vmatpush1.bf16.msra.mxu0 0
  %1639 = vmatprep.subr.bf16.mxu0 0
  %1640 = vmatpush1.bf16.msra.mxu0 0
  %1641 = vmatprep.subr.bf16.mxu0 0
  %1642 = vmatpush1.bf16.msra.mxu0 0
  %1643 = vmatprep.subr.bf16.mxu0 0
  %1644 = vmatpush1.bf16.msra.mxu0 0
  %1645 = vmatprep.subr.bf16.mxu0 0
  %1646 = vmatpush1.bf16.msra.mxu0 0
  %1647 = vmatprep.subr.bf16.mxu0 0
  %1648 = vmatpush1.bf16.msra.mxu0 0
  %1649 = vmatprep.subr.bf16.mxu0 0
  %1650 = vmatpush1.bf16.msra.mxu0 0
  %1651 = vmatprep.subr.bf16.mxu0 0
  %1652 = vmatpush1.bf16.msra.mxu0 0
  %1653 = vmatprep.mubr.bf16.mxu0 0
  %1654 = vmatmul.mubr.bf16.gmra.mrb[0].mxu0 %v953
  %v1655 = vpop.f32.mrb[0].mxu0
  %v1656 = vadd.f32 0.0, %v1655
  %v1657 = vpop.f32.mrb[0].mxu0
  %v1658 = vadd.f32 0.0, %v1657
  %v1659 = vpop.f32.mrb[0].mxu0
  %v1660 = vadd.f32 0.0, %v1659
  %v1661 = vpop.f32.mrb[0].mxu0
  %v1662 = vadd.f32 0.0, %v1661
  %1663 = vmatprep.mubr.bf16.mxu0 0
  %1664 = vmatmul.mubr.bf16.gmra.mrb[0].mxu0 %v1462
  %v1665 = vpop.f32.mrb[0].mxu0
  %v1666 = vadd.f32 0.0, %v1665
  %v1667 = vpop.f32.mrb[0].mxu0
  %v1668 = vadd.f32 0.0, %v1667
  %v1669 = vpop.f32.mrb[0].mxu0
  %v1670 = vadd.f32 0.0, %v1669
  %v1671 = vpop.f32.mrb[0].mxu0
  %v1672 = vadd.f32 0.0, %v1671
  %1673 = vdwg.mxu0
  %v1674 = vadd.f32 %v1454, %v1656
  %v1675 = vadd.f32 %v1455, %v1658
  %v1676 = vadd.f32 %v1456, %v1660
  %v1677 = vadd.f32 %v1457, %v1662
  %v1678 = vadd.f32 %v1458, %v1666
  %v1679 = vadd.f32 %v1459, %v1668
  %v1680 = vadd.f32 %v1460, %v1670
  %v1681 = vadd.f32 %v1461, %v1672
  %v1682 = vld [vmem:[#allocation3 + $0x10] sm:$0xff]
  %1683 = vmatprep.subr.bf16.mxu0 %v1590
  %1684 = vmatpush1.bf16.msra.mxu0 %v1589
  %1685 = vmatprep.subr.bf16.mxu0 %v1592
  %1686 = vmatpush1.bf16.msra.mxu0 %v1591
  %1687 = vmatprep.subr.bf16.mxu0 %v1594
  %1688 = vmatpush1.bf16.msra.mxu0 %v1593
  %1689 = vmatprep.subr.bf16.mxu0 %v1596
  %1690 = vmatpush1.bf16.msra.mxu0 %v1595
  %1691 = vmatprep.subr.bf16.mxu0 %v1598
  %1692 = vmatpush1.bf16.msra.mxu0 %v1597
  %1693 = vmatprep.subr.bf16.mxu0 %v1600
  %1694 = vmatpush1.bf16.msra.mxu0 %v1599
  %1695 = vmatprep.subr.bf16.mxu0 %v1602
  %1696 = vmatpush1.bf16.msra.mxu0 %v1601
  %1697 = vmatprep.subr.bf16.mxu0 %v1604
  %1698 = vmatpush1.bf16.msra.mxu0 %v1603
  %1699 = vmatprep.subr.bf16.mxu0 0
  %1700 = vmatpush1.bf16.msra.mxu0 0
  %1701 = vmatprep.subr.bf16.mxu0 0
  %1702 = vmatpush1.bf16.msra.mxu0 0
  %1703 = vmatprep.subr.bf16.mxu0 0
  %1704 = vmatpush1.bf16.msra.mxu0 0
  %1705 = vmatprep.subr.bf16.mxu0 0
  %1706 = vmatpush1.bf16.msra.mxu0 0
  %1707 = vmatprep.subr.bf16.mxu0 0
  %1708 = vmatpush1.bf16.msra.mxu0 0
  %1709 = vmatprep.subr.bf16.mxu0 0
  %1710 = vmatpush1.bf16.msra.mxu0 0
  %1711 = vmatprep.subr.bf16.mxu0 0
  %1712 = vmatpush1.bf16.msra.mxu0 0
  %1713 = vmatprep.subr.bf16.mxu0 0
  %1714 = vmatpush1.bf16.msra.mxu0 0
  %1715 = vmatprep.mubr.bf16.mxu0 0
  %1716 = vmatmul.mubr.bf16.gmra.mrb[0].mxu0 %v1231
  %v1717 = vpop.f32.mrb[0].mxu0
  %v1718 = vadd.f32 0.0, %v1717
  %v1719 = vpop.f32.mrb[0].mxu0
  %v1720 = vadd.f32 0.0, %v1719
  %v1721 = vpop.f32.mrb[0].mxu0
  %v1722 = vadd.f32 0.0, %v1721
  %v1723 = vpop.f32.mrb[0].mxu0
  %v1724 = vadd.f32 0.0, %v1723
  %1725 = vmatprep.mubr.bf16.mxu0 0
  %1726 = vmatmul.mubr.bf16.gmra.mrb[0].mxu0 %v1682
  %v1727 = vpop.f32.mrb[0].mxu0
  %v1728 = vadd.f32 0.0, %v1727
  %v1729 = vpop.f32.mrb[0].mxu0
  %v1730 = vadd.f32 0.0, %v1729
  %v1731 = vpop.f32.mrb[0].mxu0
  %v1732 = vadd.f32 0.0, %v1731
  %v1733 = vpop.f32.mrb[0].mxu0
  %v1734 = vadd.f32 0.0, %v1733
  %1735 = vdwg.mxu0
  %v1736 = vadd.f32 %v1516, %v1718
  %v1737 = vadd.f32 %v1517, %v1720
  %v1738 = vadd.f32 %v1518, %v1722
  %v1739 = vadd.f32 %v1519, %v1724
  %v1740 = vadd.f32 %v1520, %v1728
  %v1741 = vadd.f32 %v1521, %v1730
  %v1742 = vadd.f32 %v1522, %v1732
  %v1743 = vadd.f32 %v1523, %v1734
  %v1744 = vmax.f32 %v1674, %v1736
  %v1745 = vmax.f32 %v1675, %v1737
  %v1746 = vmax.f32 %v1676, %v1738
  %v1747 = vmax.f32 %v1677, %v1739
  %v1748 = vmax.f32 %v1678, %v1740
  %v1749 = vmax.f32 %v1679, %v1741
  %v1750 = vmax.f32 %v1680, %v1742
  %v1751 = vmax.f32 %v1681, %v1743
  %v1752 = vmax.f32 %v1744, %v1745
  %v1753 = vmax.f32 %v1746, %v1747
  %v1754 = vmax.f32 %v1748, %v1749
  %v1755 = vmax.f32 %v1750, %v1751
  %v1756 = vld [vmem:[%s4] sm:$0x1]
  %v1758 = vlaneseq
  %v1759 = vshrl.u32 %v1758, 7
  %v1760 = vsub.s32 0, %v1759
  %v1761 = vrot.slane %v1756, %v1760
  %v1763 = vadd.f32 %v1752, %v1761
  %v1764 = vadd.f32 %v1753, %v1761
  %v1765 = vadd.f32 %v1754, %v1761
  %v1766 = vadd.f32 %v1755, %v1761
  %v1767 = vmax.f32 %v1763, 0.0
  %v1768 = vmax.f32 %v1764, 0.0
  %v1769 = vmax.f32 %v1765, 0.0
  %v1770 = vmax.f32 %v1766, 0.0
  %v1771 = vpack.c.bf16 %v1768, %v1767
  %v1772 = vpack.c.bf16 %v1770, %v1769
  %1773 = vst [vmem:[#allocation4] sm:$0xff] %v1771
  %1774 = vst [vmem:[#allocation4 + $0x8] sm:$0xff] %v1772
  %v1775 = vld [vmem:[#allocation4] sm:$0xf]
  %v1776 = vld [vmem:[%s5] sm:$0xf]
  %v1777 = vld [vmem:[%s5 + $0x4] sm:$0xf]
  %v1778 = vld [vmem:[%s5 + $0x8] sm:$0xf]
  %v1779 = vld [vmem:[%s5 + $0xc] sm:$0xf]
  %v1780 = vld [vmem:[%s5 + $0x10] sm:$0xf]
  %v1781 = vld [vmem:[%s5 + $0x14] sm:$0xf]
  %v1782 = vld [vmem:[%s5 + $0x18] sm:$0xf]
  %v1783 = vld [vmem:[%s5 + $0x1c] sm:$0xf]
  %v1784 = vld [vmem:[%s5 + $0x20] sm:$0xf]
  %v1785 = vld [vmem:[%s5 + $0x24] sm:$0xf]
  %v1786 = vld [vmem:[%s5 + $0x28] sm:$0xf]
  %v1787 = vld [vmem:[%s5 + $0x2c] sm:$0xf]
  %v1788 = vld [vmem:[%s5 + $0x30] sm:$0xf]
  %v1789 = vld [vmem:[%s5 + $0x34] sm:$0xf]
  %v1790 = vld [vmem:[%s5 + $0x38] sm:$0xf]
  %v1791 = vld [vmem:[%s5 + $0x3c] sm:$0xf]
  %v1792 = vld [vmem:[#allocation4] sm:$0xf0]
  %s1793 = scalar_lea.vmem %s5, 64
  %v1794 = vld [vmem:[%s1793] sm:$0xf]
  %v1795 = vld [vmem:[%s1793 + $0x4] sm:$0xf]
  %v1796 = vld [vmem:[%s1793 + $0x8] sm:$0xf]
  %v1797 = vld [vmem:[%s1793 + $0xc] sm:$0xf]
  %v1798 = vld [vmem:[%s1793 + $0x10] sm:$0xf]
  %v1799 = vld [vmem:[%s1793 + $0x14] sm:$0xf]
  %v1800 = vld [vmem:[%s1793 + $0x18] sm:$0xf]
  %v1801 = vld [vmem:[%s1793 + $0x1c] sm:$0xf]
  %v1802 = vld [vmem:[%s1793 + $0x20] sm:$0xf]
  %v1803 = vld [vmem:[%s1793 + $0x24] sm:$0xf]
  %v1804 = vld [vmem:[%s1793 + $0x28] sm:$0xf]
  %v1805 = vld [vmem:[%s1793 + $0x2c] sm:$0xf]
  %v1806 = vld [vmem:[%s1793 + $0x30] sm:$0xf]
  %v1807 = vld [vmem:[%s1793 + $0x34] sm:$0xf]
  %v1808 = vld [vmem:[%s1793 + $0x38] sm:$0xf]
  %v1809 = vld [vmem:[%s1793 + $0x3c] sm:$0xf]
  %v1811 = vrot.slane %v1792, 4
  %v1829 = vunpack.c.l.b16 %v1794
  %v1830 = vunpack.c.l.b16 %v1795
  %v1831 = vunpack.c.l.b16 %v1796
  %v1832 = vunpack.c.l.b16 %v1797
  %v1833 = vunpack.c.l.b16 %v1798
  %v1834 = vunpack.c.l.b16 %v1799
  %v1835 = vunpack.c.l.b16 %v1800
  %v1836 = vunpack.c.l.b16 %v1801
  %v1837 = vunpack.c.l.b16 %v1802
  %v1838 = vunpack.c.l.b16 %v1803
  %v1839 = vunpack.c.l.b16 %v1804
  %v1840 = vunpack.c.l.b16 %v1805
  %v1841 = vunpack.c.l.b16 %v1806
  %v1842 = vunpack.c.l.b16 %v1807
  %v1843 = vunpack.c.l.b16 %v1808
  %v1844 = vunpack.c.l.b16 %v1809
  %v1845 = vpack.c.b16 %v1830, %v1829
  %v1846 = vpack.c.b16 %v1832, %v1831
  %v1847 = vpack.c.b16 %v1834, %v1833
  %v1848 = vpack.c.b16 %v1836, %v1835
  %v1849 = vpack.c.b16 %v1838, %v1837
  %v1850 = vpack.c.b16 %v1840, %v1839
  %v1851 = vpack.c.b16 %v1842, %v1841
  %v1852 = vpack.c.b16 %v1844, %v1843
  %1861 = vmatprep.subr.bf16.mxu0 0
  %1862 = vmatpush1.bf16.msra.mxu0 %v1845
  %1863 = vmatprep.subr.bf16.mxu0 0
  %1864 = vmatpush1.bf16.msra.mxu0 %v1846
  %1865 = vmatprep.subr.bf16.mxu0 0
  %1866 = vmatpush1.bf16.msra.mxu0 %v1847
  %1867 = vmatprep.subr.bf16.mxu0 0
  %1868 = vmatpush1.bf16.msra.mxu0 %v1848
  %1869 = vmatprep.subr.bf16.mxu0 0
  %1870 = vmatpush1.bf16.msra.mxu0 %v1849
  %1871 = vmatprep.subr.bf16.mxu0 0
  %1872 = vmatpush1.bf16.msra.mxu0 %v1850
  %1873 = vmatprep.subr.bf16.mxu0 0
  %1874 = vmatpush1.bf16.msra.mxu0 %v1851
  %1875 = vmatprep.subr.bf16.mxu0 0
  %1876 = vmatpush1.bf16.msra.mxu0 %v1852
  %1877 = vmatprep.subr.bf16.mxu0 0
  %1878 = vmatpush1.bf16.msra.mxu0 0
  %1879 = vmatprep.subr.bf16.mxu0 0
  %1880 = vmatpush1.bf16.msra.mxu0 0
  %1881 = vmatprep.subr.bf16.mxu0 0
  %1882 = vmatpush1.bf16.msra.mxu0 0
  %1883 = vmatprep.subr.bf16.mxu0 0
  %1884 = vmatpush1.bf16.msra.mxu0 0
  %1885 = vmatprep.subr.bf16.mxu0 0
  %1886 = vmatpush1.bf16.msra.mxu0 0
  %1887 = vmatprep.subr.bf16.mxu0 0
  %1888 = vmatpush1.bf16.msra.mxu0 0
  %1889 = vmatprep.subr.bf16.mxu0 0
  %1890 = vmatpush1.bf16.msra.mxu0 0
  %1891 = vmatprep.subr.bf16.mxu0 0
  %1892 = vmatpush1.bf16.msra.mxu0 0
  %1893 = vmatprep.mubr.bf16.mxu0 0
  %1894 = vmatmul.mubr.bf16.gmra.mrb[0].mxu0 %v1811
  %v1895 = vpop.f32.mrb[0].mxu0
  %v1896 = vadd.f32 0.0, %v1895
  %v1897 = vpop.f32.mrb[0].mxu0
  %v1898 = vpop.f32.mrb[0].mxu0
  %v1899 = vpop.f32.mrb[0].mxu0
  %1900 = vdwg.mxu0
  %v1917 = vunpack.c.l.b16 %v1776
  %v1918 = vunpack.c.l.b16 %v1777
  %v1919 = vunpack.c.l.b16 %v1778
  %v1920 = vunpack.c.l.b16 %v1779
  %v1921 = vunpack.c.l.b16 %v1780
  %v1922 = vunpack.c.l.b16 %v1781
  %v1923 = vunpack.c.l.b16 %v1782
  %v1924 = vunpack.c.l.b16 %v1783
  %v1925 = vunpack.c.l.b16 %v1784
  %v1926 = vunpack.c.l.b16 %v1785
  %v1927 = vunpack.c.l.b16 %v1786
  %v1928 = vunpack.c.l.b16 %v1787
  %v1929 = vunpack.c.l.b16 %v1788
  %v1930 = vunpack.c.l.b16 %v1789
  %v1931 = vunpack.c.l.b16 %v1790
  %v1932 = vunpack.c.l.b16 %v1791
  %v1933 = vpack.c.b16 %v1918, %v1917
  %v1934 = vpack.c.b16 %v1920, %v1919
  %v1935 = vpack.c.b16 %v1922, %v1921
  %v1936 = vpack.c.b16 %v1924, %v1923
  %v1937 = vpack.c.b16 %v1926, %v1925
  %v1938 = vpack.c.b16 %v1928, %v1927
  %v1939 = vpack.c.b16 %v1930, %v1929
  %v1940 = vpack.c.b16 %v1932, %v1931
  %1949 = vmatprep.subr.bf16.mxu0 0
  %1950 = vmatpush1.bf16.msra.mxu0 %v1933
  %1951 = vmatprep.subr.bf16.mxu0 0
  %1952 = vmatpush1.bf16.msra.mxu0 %v1934
  %1953 = vmatprep.subr.bf16.mxu0 0
  %1954 = vmatpush1.bf16.msra.mxu0 %v1935
  %1955 = vmatprep.subr.bf16.mxu0 0
  %1956 = vmatpush1.bf16.msra.mxu0 %v1936
  %1957 = vmatprep.subr.bf16.mxu0 0
  %1958 = vmatpush1.bf16.msra.mxu0 %v1937
  %1959 = vmatprep.subr.bf16.mxu0 0
  %1960 = vmatpush1.bf16.msra.mxu0 %v1938
  %1961 = vmatprep.subr.bf16.mxu0 0
  %1962 = vmatpush1.bf16.msra.mxu0 %v1939
  %1963 = vmatprep.subr.bf16.mxu0 0
  %1964 = vmatpush1.bf16.msra.mxu0 %v1940
  %1965 = vmatprep.subr.bf16.mxu0 0
  %1966 = vmatpush1.bf16.msra.mxu0 0
  %1967 = vmatprep.subr.bf16.mxu0 0
  %1968 = vmatpush1.bf16.msra.mxu0 0
  %1969 = vmatprep.subr.bf16.mxu0 0
  %1970 = vmatpush1.bf16.msra.mxu0 0
  %1971 = vmatprep.subr.bf16.mxu0 0
  %1972 = vmatpush1.bf16.msra.mxu0 0
  %1973 = vmatprep.subr.bf16.mxu0 0
  %1974 = vmatpush1.bf16.msra.mxu0 0
  %1975 = vmatprep.subr.bf16.mxu0 0
  %1976 = vmatpush1.bf16.msra.mxu0 0
  %1977 = vmatprep.subr.bf16.mxu0 0
  %1978 = vmatpush1.bf16.msra.mxu0 0
  %1979 = vmatprep.subr.bf16.mxu0 0
  %1980 = vmatpush1.bf16.msra.mxu0 0
  %1981 = vmatprep.mubr.bf16.mxu0 0
  %1982 = vmatmul.mubr.bf16.gmra.mrb[0].mxu0 %v1775
  %v1983 = vpop.f32.mrb[0].mxu0
  %v1984 = vadd.f32 %v1896, %v1983
  %v1985 = vpop.f32.mrb[0].mxu0
  %v1986 = vpop.f32.mrb[0].mxu0
  %v1987 = vpop.f32.mrb[0].mxu0
  %1988 = vdwg.mxu0
  %v1989 = vld [vmem:[#allocation4 + $0x8] sm:$0xf]
  %s1990 = scalar_lea.vmem %s5, 128
  %v1991 = vld [vmem:[%s1990] sm:$0xf]
  %v1992 = vld [vmem:[%s1990 + $0x4] sm:$0xf]
  %v1993 = vld [vmem:[%s1990 + $0x8] sm:$0xf]
  %v1994 = vld [vmem:[%s1990 + $0xc] sm:$0xf]
  %v1995 = vld [vmem:[%s1990 + $0x10] sm:$0xf]
  %v1996 = vld [vmem:[%s1990 + $0x14] sm:$0xf]
  %v1997 = vld [vmem:[%s1990 + $0x18] sm:$0xf]
  %v1998 = vld [vmem:[%s1990 + $0x1c] sm:$0xf]
  %v1999 = vld [vmem:[%s1990 + $0x20] sm:$0xf]
  %v2000 = vld [vmem:[%s1990 + $0x24] sm:$0xf]
  %v2001 = vld [vmem:[%s1990 + $0x28] sm:$0xf]
  %v2002 = vld [vmem:[%s1990 + $0x2c] sm:$0xf]
  %v2003 = vld [vmem:[%s1990 + $0x30] sm:$0xf]
  %v2004 = vld [vmem:[%s1990 + $0x34] sm:$0xf]
  %v2005 = vld [vmem:[%s1990 + $0x38] sm:$0xf]
  %v2006 = vld [vmem:[%s1990 + $0x3c] sm:$0xf]
  %v2023 = vunpack.c.l.b16 %v1991
  %v2024 = vunpack.c.l.b16 %v1992
  %v2025 = vunpack.c.l.b16 %v1993
  %v2026 = vunpack.c.l.b16 %v1994
  %v2027 = vunpack.c.l.b16 %v1995
  %v2028 = vunpack.c.l.b16 %v1996
  %v2029 = vunpack.c.l.b16 %v1997
  %v2030 = vunpack.c.l.b16 %v1998
  %v2031 = vunpack.c.l.b16 %v1999
  %v2032 = vunpack.c.l.b16 %v2000
  %v2033 = vunpack.c.l.b16 %v2001
  %v2034 = vunpack.c.l.b16 %v2002
  %v2035 = vunpack.c.l.b16 %v2003
  %v2036 = vunpack.c.l.b16 %v2004
  %v2037 = vunpack.c.l.b16 %v2005
  %v2038 = vunpack.c.l.b16 %v2006
  %v2039 = vpack.c.b16 %v2024, %v2023
  %v2040 = vpack.c.b16 %v2026, %v2025
  %v2041 = vpack.c.b16 %v2028, %v2027
  %v2042 = vpack.c.b16 %v2030, %v2029
  %v2043 = vpack.c.b16 %v2032, %v2031
  %v2044 = vpack.c.b16 %v2034, %v2033
  %v2045 = vpack.c.b16 %v2036, %v2035
  %v2046 = vpack.c.b16 %v2038, %v2037
  %2055 = vmatprep.subr.bf16.mxu0 0
  %2056 = vmatpush1.bf16.msra.mxu0 %v2039
  %2057 = vmatprep.subr.bf16.mxu0 0
  %2058 = vmatpush1.bf16.msra.mxu0 %v2040
  %2059 = vmatprep.subr.bf16.mxu0 0
  %2060 = vmatpush1.bf16.msra.mxu0 %v2041
  %2061 = vmatprep.subr.bf16.mxu0 0
  %2062 = vmatpush1.bf16.msra.mxu0 %v2042
  %2063 = vmatprep.subr.bf16.mxu0 0
  %2064 = vmatpush1.bf16.msra.mxu0 %v2043
  %2065 = vmatprep.subr.bf16.mxu0 0
  %2066 = vmatpush1.bf16.msra.mxu0 %v2044
  %2067 = vmatprep.subr.bf16.mxu0 0
  %2068 = vmatpush1.bf16.msra.mxu0 %v2045
  %2069 = vmatprep.subr.bf16.mxu0 0
  %2070 = vmatpush1.bf16.msra.mxu0 %v2046
  %2071 = vmatprep.subr.bf16.mxu0 0
  %2072 = vmatpush1.bf16.msra.mxu0 0
  %2073 = vmatprep.subr.bf16.mxu0 0
  %2074 = vmatpush1.bf16.msra.mxu0 0
  %2075 = vmatprep.subr.bf16.mxu0 0
  %2076 = vmatpush1.bf16.msra.mxu0 0
  %2077 = vmatprep.subr.bf16.mxu0 0
  %2078 = vmatpush1.bf16.msra.mxu0 0
  %2079 = vmatprep.subr.bf16.mxu0 0
  %2080 = vmatpush1.bf16.msra.mxu0 0
  %2081 = vmatprep.subr.bf16.mxu0 0
  %2082 = vmatpush1.bf16.msra.mxu0 0
  %2083 = vmatprep.subr.bf16.mxu0 0
  %2084 = vmatpush1.bf16.msra.mxu0 0
  %2085 = vmatprep.subr.bf16.mxu0 0
  %2086 = vmatpush1.bf16.msra.mxu0 0
  %2087 = vmatprep.mubr.bf16.mxu0 0
  %2088 = vmatmul.mubr.bf16.gmra.mrb[0].mxu0 %v1989
  %v2089 = vpop.f32.mrb[0].mxu0
  %v2090 = vadd.f32 0.0, %v2089
  %v2091 = vpop.f32.mrb[0].mxu0
  %v2092 = vpop.f32.mrb[0].mxu0
  %v2093 = vpop.f32.mrb[0].mxu0
  %2094 = vdwg.mxu0
  %v2095 = vadd.f32 %v1984, %v2090
  %v2096 = vld [vmem:[#allocation4 + $0x8] sm:$0xf0]
  %s2097 = scalar_lea.vmem %s5, 192
  %v2098 = vld [vmem:[%s2097] sm:$0xf]
  %v2099 = vld [vmem:[%s2097 + $0x4] sm:$0xf]
  %v2100 = vld [vmem:[%s2097 + $0x8] sm:$0xf]
  %v2101 = vld [vmem:[%s2097 + $0xc] sm:$0xf]
  %v2102 = vld [vmem:[%s2097 + $0x10] sm:$0xf]
  %v2103 = vld [vmem:[%s2097 + $0x14] sm:$0xf]
  %v2104 = vld [vmem:[%s2097 + $0x18] sm:$0xf]
  %v2105 = vld [vmem:[%s2097 + $0x1c] sm:$0xf]
  %v2106 = vld [vmem:[%s2097 + $0x20] sm:$0xf]
  %v2107 = vld [vmem:[%s2097 + $0x24] sm:$0xf]
  %v2108 = vld [vmem:[%s2097 + $0x28] sm:$0xf]
  %v2109 = vld [vmem:[%s2097 + $0x2c] sm:$0xf]
  %v2110 = vld [vmem:[%s2097 + $0x30] sm:$0xf]
  %v2111 = vld [vmem:[%s2097 + $0x34] sm:$0xf]
  %v2112 = vld [vmem:[%s2097 + $0x38] sm:$0xf]
  %v2113 = vld [vmem:[%s2097 + $0x3c] sm:$0xf]
  %v2115 = vrot.slane %v2096, 4
  %v2133 = vunpack.c.l.b16 %v2098
  %v2134 = vunpack.c.l.b16 %v2099
  %v2135 = vunpack.c.l.b16 %v2100
  %v2136 = vunpack.c.l.b16 %v2101
  %v2137 = vunpack.c.l.b16 %v2102
  %v2138 = vunpack.c.l.b16 %v2103
  %v2139 = vunpack.c.l.b16 %v2104
  %v2140 = vunpack.c.l.b16 %v2105
  %v2141 = vunpack.c.l.b16 %v2106
  %v2142 = vunpack.c.l.b16 %v2107
  %v2143 = vunpack.c.l.b16 %v2108
  %v2144 = vunpack.c.l.b16 %v2109
  %v2145 = vunpack.c.l.b16 %v2110
  %v2146 = vunpack.c.l.b16 %v2111
  %v2147 = vunpack.c.l.b16 %v2112
  %v2148 = vunpack.c.l.b16 %v2113
  %v2149 = vpack.c.b16 %v2134, %v2133
  %v2150 = vpack.c.b16 %v2136, %v2135
  %v2151 = vpack.c.b16 %v2138, %v2137
  %v2152 = vpack.c.b16 %v2140, %v2139
  %v2153 = vpack.c.b16 %v2142, %v2141
  %v2154 = vpack.c.b16 %v2144, %v2143
  %v2155 = vpack.c.b16 %v2146, %v2145
  %v2156 = vpack.c.b16 %v2148, %v2147
  %2165 = vmatprep.subr.bf16.mxu0 0
  %2166 = vmatpush1.bf16.msra.mxu0 %v2149
  %2167 = vmatprep.subr.bf16.mxu0 0
  %2168 = vmatpush1.bf16.msra.mxu0 %v2150
  %2169 = vmatprep.subr.bf16.mxu0 0
  %2170 = vmatpush1.bf16.msra.mxu0 %v2151
  %2171 = vmatprep.subr.bf16.mxu0 0
  %2172 = vmatpush1.bf16.msra.mxu0 %v2152
  %2173 = vmatprep.subr.bf16.mxu0 0
  %2174 = vmatpush1.bf16.msra.mxu0 %v2153
  %2175 = vmatprep.subr.bf16.mxu0 0
  %2176 = vmatpush1.bf16.msra.mxu0 %v2154
  %2177 = vmatprep.subr.bf16.mxu0 0
  %2178 = vmatpush1.bf16.msra.mxu0 %v2155
  %2179 = vmatprep.subr.bf16.mxu0 0
  %2180 = vmatpush1.bf16.msra.mxu0 %v2156
  %2181 = vmatprep.subr.bf16.mxu0 0
  %2182 = vmatpush1.bf16.msra.mxu0 0
  %2183 = vmatprep.subr.bf16.mxu0 0
  %2184 = vmatpush1.bf16.msra.mxu0 0
  %2185 = vmatprep.subr.bf16.mxu0 0
  %2186 = vmatpush1.bf16.msra.mxu0 0
  %2187 = vmatprep.subr.bf16.mxu0 0
  %2188 = vmatpush1.bf16.msra.mxu0 0
  %2189 = vmatprep.subr.bf16.mxu0 0
  %2190 = vmatpush1.bf16.msra.mxu0 0
  %2191 = vmatprep.subr.bf16.mxu0 0
  %2192 = vmatpush1.bf16.msra.mxu0 0
  %2193 = vmatprep.subr.bf16.mxu0 0
  %2194 = vmatpush1.bf16.msra.mxu0 0
  %2195 = vmatprep.subr.bf16.mxu0 0
  %2196 = vmatpush1.bf16.msra.mxu0 0
  %2197 = vmatprep.mubr.bf16.mxu0 0
  %2198 = vmatmul.mubr.bf16.gmra.mrb[0].mxu0 %v2115
  %v2199 = vpop.f32.mrb[0].mxu0
  %v2200 = vadd.f32 0.0, %v2199
  %v2201 = vpop.f32.mrb[0].mxu0
  %v2202 = vpop.f32.mrb[0].mxu0
  %v2203 = vpop.f32.mrb[0].mxu0
  %2204 = vdwg.mxu0
  %v2205 = vadd.f32 %v2095, %v2200
  %v2206 = vld [vmem:[%s6] sm:$0x1]
  %v2208 = vlaneseq
  %v2209 = vshrl.u32 %v2208, 7
  %v2210 = vsub.s32 0, %v2209
  %v2211 = vrot.slane %v2206, %v2210
  %v2213 = vadd.f32 %v2205, %v2211
  %v2214 = vmax.f32 %v2213, 0.0
  %v2215 = vpack.c.bf16 %v2214, %v2214
  %v2216 = vld [vmem:[%s7] sm:$0xf]
  %v2217 = vld [vmem:[%s7 + $0x4] sm:$0xf]
  %v2218 = vld [vmem:[%s7 + $0x8] sm:$0xf]
  %v2219 = vld [vmem:[%s7 + $0xc] sm:$0xf]
  %v2220 = vld [vmem:[%s7 + $0x10] sm:$0xf]
  %v2221 = vld [vmem:[%s7 + $0x14] sm:$0xf]
  %v2222 = vld [vmem:[%s7 + $0x18] sm:$0xf]
  %v2223 = vld [vmem:[%s7 + $0x1c] sm:$0xf]
  %v2224 = vld [vmem:[%s7 + $0x20] sm:$0xf]
  %v2225 = vld [vmem:[%s7 + $0x24] sm:$0xf]
  %v2226 = vld [vmem:[%s7 + $0x28] sm:$0xf]
  %v2227 = vld [vmem:[%s7 + $0x2c] sm:$0xf]
  %v2228 = vld [vmem:[%s7 + $0x30] sm:$0xf]
  %v2229 = vld [vmem:[%s7 + $0x34] sm:$0xf]
  %v2230 = vld [vmem:[%s7 + $0x38] sm:$0xf]
  %v2231 = vld [vmem:[%s7 + $0x3c] sm:$0xf]
  %v2232 = vld [vmem:[%s8] sm:$0x1]
  %v2234 = vlaneseq
  %v2235 = vshrl.u32 %v2234, 7
  %v2236 = vsub.s32 0, %v2235
  %v2237 = vrot.slane %v2232, %v2236
  %v2255 = vunpack.c.l.b16 %v2216
  %v2256 = vunpack.c.l.b16 %v2217
  %v2257 = vunpack.c.l.b16 %v2218
  %v2258 = vunpack.c.l.b16 %v2219
  %v2259 = vunpack.c.l.b16 %v2220
  %v2260 = vunpack.c.l.b16 %v2221
  %v2261 = vunpack.c.l.b16 %v2222
  %v2262 = vunpack.c.l.b16 %v2223
  %v2263 = vunpack.c.l.b16 %v2224
  %v2264 = vunpack.c.l.b16 %v2225
  %v2265 = vunpack.c.l.b16 %v2226
  %v2266 = vunpack.c.l.b16 %v2227
  %v2267 = vunpack.c.l.b16 %v2228
  %v2268 = vunpack.c.l.b16 %v2229
  %v2269 = vunpack.c.l.b16 %v2230
  %v2270 = vunpack.c.l.b16 %v2231
  %v2271 = vpack.c.b16 %v2256, %v2255
  %v2272 = vpack.c.b16 %v2258, %v2257
  %v2273 = vpack.c.b16 %v2260, %v2259
  %v2274 = vpack.c.b16 %v2262, %v2261
  %v2275 = vpack.c.b16 %v2264, %v2263
  %v2276 = vpack.c.b16 %v2266, %v2265
  %v2277 = vpack.c.b16 %v2268, %v2267
  %v2278 = vpack.c.b16 %v2270, %v2269
  %2287 = vmatprep.subr.bf16.mxu0 0
  %2288 = vmatpush1.bf16.msra.mxu0 %v2271
  %2289 = vmatprep.subr.bf16.mxu0 0
  %2290 = vmatpush1.bf16.msra.mxu0 %v2272
  %2291 = vmatprep.subr.bf16.mxu0 0
  %2292 = vmatpush1.bf16.msra.mxu0 %v2273
  %2293 = vmatprep.subr.bf16.mxu0 0
  %2294 = vmatpush1.bf16.msra.mxu0 %v2274
  %2295 = vmatprep.subr.bf16.mxu0 0
  %2296 = vmatpush1.bf16.msra.mxu0 %v2275
  %2297 = vmatprep.subr.bf16.mxu0 0
  %2298 = vmatpush1.bf16.msra.mxu0 %v2276
  %2299 = vmatprep.subr.bf16.mxu0 0
  %2300 = vmatpush1.bf16.msra.mxu0 %v2277
  %2301 = vmatprep.subr.bf16.mxu0 0
  %2302 = vmatpush1.bf16.msra.mxu0 %v2278
  %2303 = vmatprep.subr.bf16.mxu0 0
  %2304 = vmatpush1.bf16.msra.mxu0 0
  %2305 = vmatprep.subr.bf16.mxu0 0
  %2306 = vmatpush1.bf16.msra.mxu0 0
  %2307 = vmatprep.subr.bf16.mxu0 0
  %2308 = vmatpush1.bf16.msra.mxu0 0
  %2309 = vmatprep.subr.bf16.mxu0 0
  %2310 = vmatpush1.bf16.msra.mxu0 0
  %2311 = vmatprep.subr.bf16.mxu0 0
  %2312 = vmatpush1.bf16.msra.mxu0 0
  %2313 = vmatprep.subr.bf16.mxu0 0
  %2314 = vmatpush1.bf16.msra.mxu0 0
  %2315 = vmatprep.subr.bf16.mxu0 0
  %2316 = vmatpush1.bf16.msra.mxu0 0
  %2317 = vmatprep.subr.bf16.mxu0 0
  %2318 = vmatpush1.bf16.msra.mxu0 0
  %2319 = vmatprep.mubr.bf16.mxu0 0
  %2320 = vmatmul.mubr.bf16.gmra.mrb[0].mxu0 %v2215
  %v2321 = vpop.f32.mrb[0].mxu0
  %v2322 = vadd.f32 %v2237, %v2321
  %v2323 = vpop.f32.mrb[0].mxu0
  %v2324 = vpop.f32.mrb[0].mxu0
  %v2325 = vpop.f32.mrb[0].mxu0
  %2326 = vdwg.mxu0
  %2327 = vmax.xlane.f32.xlu0 %v2322
  %v2328 = vpop.xlane.xlu0 %2327
  %v2329 = vsub.f32 %v2322, %v2328
  %v2330 = vmul.f32 %v2329, 1.442695
  %v2331 = vpow.pop %v2330
  %2332 = vadd.xlane.f32.xlu0 %v2331
  %v2333 = vpop.xlane.xlu0 %2332
  %v2334 = vlog2.pop %v2333
  %v2335 = vmul.f32 %v2334, 0.6931472
  %v2336 = vsub.f32 %v2329, %v2335
  %2337 = vst [vmem:[%s9] sm:$0xff] %v2336
  // Predicated region
  $region38: #{lenet_forward.1} parent=0 // pred_check
    _
  $region39: #{lenet_forward.1} parent=0 // pred_check_branch
    %2339 = sbr.rel (0) target = $region41
  $region40: #{lenet_forward.1} parent=0 // pred_region
    _
  $region41: #{lenet_forward.1} parent=0 // pred_fallthru
    _
  // Predicated region
  $region42: #{lenet_forward.1} parent=0 // pred_check
    _
  $region43: #{lenet_forward.1} parent=0 // pred_check_branch
    %2341 = sbr.rel (0) target = $region45
  $region44: #{lenet_forward.1} parent=0 // pred_region
    _
  $region45: #{lenet_forward.1} parent=0 // pred_fallthru
    _

</llo_original>
